<compile_context>
chip_gen: v6e
topology: v6e:2x2x1
jax: 0.10.0
libtpu: 0.0.40
codegen_flags: <defaults>
</compile_context>

<pallas_src>
import jax
import jax.numpy as jnp
from jax.experimental import pallas as pl


# ------------------------------ BlockSpec helper ----------------------------- #

def _full_spec(shape):
    """Whole array as a single VMEM-resident block (grid-less pallas_call)."""
    nd = len(shape)
    return pl.BlockSpec(tuple(shape), lambda *_: (0,) * nd)


# ------------------------------- Pallas kernel ------------------------------- #

def _ggnn_fused_kernel(h0_ref, a_ref, w_ref, b_ref, out_ref):
    """All GGNN layers in one invocation; h carried as a value across layers.

    w_ref: (L, 6H, H) per layer rows = [Wr_m; Wz_m; Wn_m; Wr_h; Wz_h; Wn_h]
           (the "_m" blocks already have the GatedGraphConv W folded in).
    b_ref: (L, 4, H)  rows = [b_r (summed), b_z (summed), b_in, b_hn].
    """
    H = h0_ref.shape[1]
    L = w_ref.shape[0]

    a = a_ref[...]          # (N, N) dense adjacency, loaded once
    h = h0_ref[...]         # (N, H) initial node states

    # Static Python loop == lax.fori_loop(..., unroll=True): L is small/static.
    for l in range(L):
        # message aggregation; W is folded into the m-side gate weights.
        m = jnp.dot(a, h, preferred_element_type=jnp.float32)          # (N, H)

        b = b_ref[l]                                                    # (4, H)
        w_r_m = w_ref[l, 0 * H:1 * H, :]                                # (H, H)
        w_z_m = w_ref[l, 1 * H:2 * H, :]
        w_n_m = w_ref[l, 2 * H:3 * H, :]
        w_r_h = w_ref[l, 3 * H:4 * H, :]
        w_z_h = w_ref[l, 4 * H:5 * H, :]
        w_n_h = w_ref[l, 5 * H:6 * H, :]

        # GRUCell(m, h), PyTorch gate order [r, z, n]; every matmul output is
        # a full (N, H) tile (no sub-lane slicing of outputs).
        r = jax.nn.sigmoid(
            jnp.dot(m, w_r_m, preferred_element_type=jnp.float32)
            + jnp.dot(h, w_r_h, preferred_element_type=jnp.float32)
            + b[0:1])
        z = jax.nn.sigmoid(
            jnp.dot(m, w_z_m, preferred_element_type=jnp.float32)
            + jnp.dot(h, w_z_h, preferred_element_type=jnp.float32)
            + b[1:2])
        n = jnp.tanh(
            jnp.dot(m, w_n_m, preferred_element_type=jnp.float32) + b[2:3]
            + r * (jnp.dot(h, w_n_h, preferred_element_type=jnp.float32) + b[3:4]))
        h = (1.0 - z) * n + z * h

    out_ref[...] = h        # written exactly once


# --------------------------------- wrapper ----------------------------------- #

def build_dense_adjacency(edge_index, num_total_nodes):
    """A[dst, src] = #edges src->dst (PyG 'source_to_target' flow).

    Hoisted out of the forward path: precompute once per dataset when the
    edge structure is static.
    """
    src, dst = edge_index[0], edge_index[1]
    return jnp.zeros((num_total_nodes, num_total_nodes),
                     jnp.float32).at[dst, src].add(1.0)


def ggnn_forward(x_int, a, params, num_trees, num_nodes):
    """Full GGNN forward. Embeddings / root gather / output linear are XLA glue."""
    N = num_trees * num_nodes
    H = params["class_emb"].shape[1]
    L = len(params["layers"])

    # embeddings (gather -> XLA glue)
    h0 = (jnp.take(params["class_emb"], x_int[:, 0], axis=0)
          + jnp.take(params["neigh_emb"], x_int[:, 1], axis=0)).astype(jnp.float32)

    # Host-side weight prep (f32): fold W into the GRU input weights, split per
    # gate and per source (m vs h), pack into one (L, 6H, H) weight slab and one
    # (L, 4, H) bias slab.  Valid only because each GatedGraphConv has
    # num_layers=1 internally and aggr='add'.
    w_list, b_list = [], []
    for lp in params["layers"]:
        wih_eff = lp["w"] @ lp["wih_t"]                 # (H, 3H)  W folded in, f32
        whh = lp["whh_t"]                               # (H, 3H)
        w_l = jnp.concatenate(
            [wih_eff[:, :H], wih_eff[:, H:2 * H], wih_eff[:, 2 * H:],
             whh[:, :H],     whh[:, H:2 * H],     whh[:, 2 * H:]], axis=0)  # (6H, H)
        b_l = jnp.stack(
            [(lp["bih"][:, :H] + lp["bhh"][:, :H])[0],
             (lp["bih"][:, H:2 * H] + lp["bhh"][:, H:2 * H])[0],
             lp["bih"][:, 2 * H:][0],
             lp["bhh"][:, 2 * H:][0]], axis=0)                              # (4, H)
        w_list.append(w_l)
        b_list.append(b_l)
    w_all = jnp.stack(w_list).astype(jnp.float32)       # (L, 6H, H)
    b_all = jnp.stack(b_list).astype(jnp.float32)       # (L, 4, H)

    # Single grid-less pallas_call: everything resident in VMEM, all layers
    # fused inside the kernel.
    h_final = pl.pallas_call(
        _ggnn_fused_kernel,
        out_shape=jax.ShapeDtypeStruct((N, H), jnp.float32),
        in_specs=[_full_spec((N, H)), _full_spec((N, N)),
                  _full_spec(w_all.shape), _full_spec(b_all.shape)],
        out_specs=_full_spec((N, H)),
    )(h0, a, w_all, b_all)

    # root nodes (node 0 of each tree) + tiny output linear: plain XLA.
    root_idx = jnp.arange(num_trees) * num_nodes
    roots = jnp.take(h_final, root_idx, axis=0)
    return roots @ params["w_out_t"]


# ----------------------------- pure-JAX reference ---------------------------- #

def ggnn_forward_ref(x_int, edge_index, params, num_trees, num_nodes):
    N = num_trees * num_nodes
    h = (jnp.take(params["class_emb"], x_int[:, 0], axis=0)
         + jnp.take(params["neigh_emb"], x_int[:, 1], axis=0)).astype(jnp.float32)
    src, dst = edge_index[0], edge_index[1]
    a = jnp.zeros((N, N), jnp.float32).at[dst, src].add(1.0)
    for lp in params["layers"]:
        m = a @ (h @ lp["w"])
        gi = m @ lp["wih_t"] + lp["bih"]
        gh = h @ lp["whh_t"] + lp["bhh"]
        H = h.shape[1]
        r = jax.nn.sigmoid(gi[:, :H] + gh[:, :H])
        z = jax.nn.sigmoid(gi[:, H:2 * H] + gh[:, H:2 * H])
        n = jnp.tanh(gi[:, 2 * H:] + r * gh[:, 2 * H:])
        h = (1.0 - z) * n + z * h
    roots = jnp.take(h, jnp.arange(num_trees) * num_nodes, axis=0)
    return roots @ params["w_out_t"]


# ----------------------------------- main ------------------------------------ #

if __name__ == "__main__":
    # small config consistent with the module
    input_dim = 8       # number of node classes
    hidden_dim = 32
    output_dim = 8
    num_layers = 3
    num_trees = 2       # batch size
    num_nodes = 8       # nodes per tree (node 0 is the root)
    N = num_trees * num_nodes

    key = jax.random.PRNGKey(0)
    keys = jax.random.split(key, 8 + 5 * num_layers)
    ki = iter(keys)

    def rnd(shape, scale=0.1):
        return (scale * jax.random.normal(next(ki), shape)).astype(jnp.float32)

    params = {
        "class_emb": rnd((input_dim, hidden_dim), 1.0),         # nn.Embedding
        "neigh_emb": rnd((input_dim + 1, hidden_dim), 1.0),     # nn.Embedding
        "w_out_t":   rnd((hidden_dim, output_dim)),             # Linear weight^T (no bias)
        "layers": [],
    }
    for _ in range(num_layers):
        params["layers"].append({
            "w":     rnd((hidden_dim, hidden_dim)),              # GatedGraphConv weight[0]
            "wih_t": rnd((hidden_dim, 3 * hidden_dim)),          # GRUCell weight_ih^T
            "whh_t": rnd((hidden_dim, 3 * hidden_dim)),          # GRUCell weight_hh^T
            "bih":   rnd((1, 3 * hidden_dim)),                   # GRUCell bias_ih
            "bhh":   rnd((1, 3 * hidden_dim)),                   # GRUCell bias_hh
        })
    # TODO(synk): self.layer_norms are constructed in __init__ but never applied
    # in forward(), so they are intentionally omitted here.

    # synthetic "data": node features (class id, neighbour count), tree edges
    k_cls, k_nb = jax.random.split(next(ki))
    x_classes = jax.random.randint(k_cls, (N,), 0, input_dim, jnp.int32)
    x_neigh = jax.random.randint(k_nb, (N,), 0, input_dim + 1, jnp.int32)
    x_int = jnp.stack([x_classes, x_neigh], axis=1)              # (N, 2) int32

    # child -> parent edges of a binary tree, per tree in the batch
    srcs, dsts = [], []
    for t in range(num_trees):
        base = t * num_nodes
        for i in range(1, num_nodes):
            srcs.append(base + i)
            dsts.append(base + (i - 1) // 2)
    edge_index = jnp.array([srcs, dsts], dtype=jnp.int32)        # (2, E)

    # dense adjacency, precomputed once (edge structure is static per dataset)
    a = build_dense_adjacency(edge_index, N)

    logits = ggnn_forward(x_int, a, params, num_trees, num_nodes)
    logits = jax.block_until_ready(logits)

    ref = ggnn_forward_ref(x_int, edge_index, params, num_trees, num_nodes)
    assert logits.shape == (num_trees, output_dim)
    # W folded into the GRU input weights changes FP association slightly.
    assert jnp.allclose(logits, ref, atol=1e-4, rtol=1e-4), "mismatch vs JAX ref"

    print("KERNEL_OK")
</pallas_src>

<mosaic_0001>
module attributes {stable_mosaic.version = 11 : i64} {
  func.func @_ggnn_fused_kernel(%arg0: memref<16x32xf32, #tpu.memory_space<vmem>>, %arg1: memref<16x16xf32, #tpu.memory_space<vmem>>, %arg2: memref<3x192x32xf32, #tpu.memory_space<vmem>>, %arg3: memref<3x4x32xf32, #tpu.memory_space<vmem>>, %arg4: memref<16x32xf32, #tpu.memory_space<vmem>>) attributes {dimension_semantics = [], scalar_prefetch = 0 : i64, scratch_operands = 0 : i64, tpu.core_type = #tpu.core_type<tc>} {
    %c0 = arith.constant 0 : index
    %c0_0 = arith.constant 0 : index
    %0 = vector.load %arg1[%c0, %c0_0] : memref<16x16xf32, #tpu.memory_space<vmem>>, vector<16x16xf32>
    %c0_1 = arith.constant 0 : index
    %c0_2 = arith.constant 0 : index
    %1 = vector.load %arg0[%c0_1, %c0_2] : memref<16x32xf32, #tpu.memory_space<vmem>>, vector<16x32xf32>
    %cst = arith.constant dense<0.000000e+00> : vector<16x32xf32>
    %2 = tpu.matmul %0, %1, %cst {dimension_numbers = #tpu.dot_dimension_numbers<[1], [0], [0], [1], [0, 0, 1, 1], [], []>} : vector<16x16xf32>, vector<16x32xf32>, vector<16x32xf32> -> vector<16x32xf32>
    %c0_3 = arith.constant 0 : index
    %c0_4 = arith.constant 0 : index
    %c0_5 = arith.constant 0 : index
    %3 = vector.load %arg3[%c0_3, %c0_4, %c0_5] : memref<3x4x32xf32, #tpu.memory_space<vmem>>, vector<1x4x32xf32>
    %4 = vector.shape_cast %3 : vector<1x4x32xf32> to vector<4x32xf32>
    %c0_6 = arith.constant 0 : index
    %c0_7 = arith.constant 0 : index
    %c0_8 = arith.constant 0 : index
    %5 = vector.load %arg2[%c0_6, %c0_7, %c0_8] : memref<3x192x32xf32, #tpu.memory_space<vmem>>, vector<1x32x32xf32>
    %6 = vector.shape_cast %5 : vector<1x32x32xf32> to vector<32x32xf32>
    %c0_9 = arith.constant 0 : index
    %c32 = arith.constant 32 : index
    %c0_10 = arith.constant 0 : index
    %7 = vector.load %arg2[%c0_9, %c32, %c0_10] : memref<3x192x32xf32, #tpu.memory_space<vmem>>, vector<1x32x32xf32>
    %8 = vector.shape_cast %7 : vector<1x32x32xf32> to vector<32x32xf32>
    %c0_11 = arith.constant 0 : index
    %c64 = arith.constant 64 : index
    %c0_12 = arith.constant 0 : index
    %9 = vector.load %arg2[%c0_11, %c64, %c0_12] : memref<3x192x32xf32, #tpu.memory_space<vmem>>, vector<1x32x32xf32>
    %10 = vector.shape_cast %9 : vector<1x32x32xf32> to vector<32x32xf32>
    %c0_13 = arith.constant 0 : index
    %c96 = arith.constant 96 : index
    %c0_14 = arith.constant 0 : index
    %11 = vector.load %arg2[%c0_13, %c96, %c0_14] : memref<3x192x32xf32, #tpu.memory_space<vmem>>, vector<1x32x32xf32>
    %12 = vector.shape_cast %11 : vector<1x32x32xf32> to vector<32x32xf32>
    %c0_15 = arith.constant 0 : index
    %c128 = arith.constant 128 : index
    %c0_16 = arith.constant 0 : index
    %13 = vector.load %arg2[%c0_15, %c128, %c0_16] : memref<3x192x32xf32, #tpu.memory_space<vmem>>, vector<1x32x32xf32>
    %14 = vector.shape_cast %13 : vector<1x32x32xf32> to vector<32x32xf32>
    %c0_17 = arith.constant 0 : index
    %c160 = arith.constant 160 : index
    %c0_18 = arith.constant 0 : index
    %15 = vector.load %arg2[%c0_17, %c160, %c0_18] : memref<3x192x32xf32, #tpu.memory_space<vmem>>, vector<1x32x32xf32>
    %16 = vector.shape_cast %15 : vector<1x32x32xf32> to vector<32x32xf32>
    %cst_19 = arith.constant dense<0.000000e+00> : vector<16x32xf32>
    %17 = tpu.matmul %2, %6, %cst_19 {dimension_numbers = #tpu.dot_dimension_numbers<[1], [0], [0], [1], [0, 0, 1, 1], [], []>} : vector<16x32xf32>, vector<32x32xf32>, vector<16x32xf32> -> vector<16x32xf32>
    %cst_20 = arith.constant dense<0.000000e+00> : vector<16x32xf32>
    %18 = tpu.matmul %1, %12, %cst_20 {dimension_numbers = #tpu.dot_dimension_numbers<[1], [0], [0], [1], [0, 0, 1, 1], [], []>} : vector<16x32xf32>, vector<32x32xf32>, vector<16x32xf32> -> vector<16x32xf32>
    %19 = arith.addf %17, %18 : vector<16x32xf32>
    %20 = vector.extract_strided_slice %4 {offsets = [0, 0], sizes = [1, 32], strides = [1, 1]} : vector<4x32xf32> to vector<1x32xf32>
    %21 = vector.broadcast %20 : vector<1x32xf32> to vector<16x32xf32>
    %22 = arith.addf %19, %21 : vector<16x32xf32>
    %23 = arith.negf %22 : vector<16x32xf32>
    %24 = math.exp %23 : vector<16x32xf32>
    %cst_21 = arith.constant 1.000000e+00 : f32
    %25 = vector.broadcast %cst_21 : f32 to vector<16x32xf32>
    %26 = arith.addf %25, %24 : vector<16x32xf32>
    %27 = arith.divf %25, %26 : vector<16x32xf32>
    %cst_22 = arith.constant dense<0.000000e+00> : vector<16x32xf32>
    %28 = tpu.matmul %2, %8, %cst_22 {dimension_numbers = #tpu.dot_dimension_numbers<[1], [0], [0], [1], [0, 0, 1, 1], [], []>} : vector<16x32xf32>, vector<32x32xf32>, vector<16x32xf32> -> vector<16x32xf32>
    %cst_23 = arith.constant dense<0.000000e+00> : vector<16x32xf32>
    %29 = tpu.matmul %1, %14, %cst_23 {dimension_numbers = #tpu.dot_dimension_numbers<[1], [0], [0], [1], [0, 0, 1, 1], [], []>} : vector<16x32xf32>, vector<32x32xf32>, vector<16x32xf32> -> vector<16x32xf32>
    %30 = arith.addf %28, %29 : vector<16x32xf32>
    %31 = vector.extract_strided_slice %4 {offsets = [1, 0], sizes = [1, 32], strides = [1, 1]} : vector<4x32xf32> to vector<1x32xf32>
    %32 = vector.broadcast %31 : vector<1x32xf32> to vector<16x32xf32>
    %33 = arith.addf %30, %32 : vector<16x32xf32>
    %34 = arith.negf %33 : vector<16x32xf32>
    %35 = math.exp %34 : vector<16x32xf32>
    %cst_24 = arith.constant 1.000000e+00 : f32
    %36 = vector.broadcast %cst_24 : f32 to vector<16x32xf32>
    %37 = arith.addf %36, %35 : vector<16x32xf32>
    %38 = arith.divf %36, %37 : vector<16x32xf32>
    %cst_25 = arith.constant dense<0.000000e+00> : vector<16x32xf32>
    %39 = tpu.matmul %2, %10, %cst_25 {dimension_numbers = #tpu.dot_dimension_numbers<[1], [0], [0], [1], [0, 0, 1, 1], [], []>} : vector<16x32xf32>, vector<32x32xf32>, vector<16x32xf32> -> vector<16x32xf32>
    %40 = vector.extract_strided_slice %4 {offsets = [2, 0], sizes = [1, 32], strides = [1, 1]} : vector<4x32xf32> to vector<1x32xf32>
    %41 = vector.broadcast %40 : vector<1x32xf32> to vector<16x32xf32>
    %42 = arith.addf %39, %41 : vector<16x32xf32>
    %cst_26 = arith.constant dense<0.000000e+00> : vector<16x32xf32>
    %43 = tpu.matmul %1, %16, %cst_26 {dimension_numbers = #tpu.dot_dimension_numbers<[1], [0], [0], [1], [0, 0, 1, 1], [], []>} : vector<16x32xf32>, vector<32x32xf32>, vector<16x32xf32> -> vector<16x32xf32>
    %44 = vector.extract_strided_slice %4 {offsets = [3, 0], sizes = [1, 32], strides = [1, 1]} : vector<4x32xf32> to vector<1x32xf32>
    %45 = vector.broadcast %44 : vector<1x32xf32> to vector<16x32xf32>
    %46 = arith.addf %43, %45 : vector<16x32xf32>
    %47 = arith.mulf %27, %46 : vector<16x32xf32>
    %48 = arith.addf %42, %47 : vector<16x32xf32>
    %49 = math.tanh %48 : vector<16x32xf32>
    %cst_27 = arith.constant 1.000000e+00 : f32
    %50 = vector.broadcast %cst_27 : f32 to vector<16x32xf32>
    %51 = arith.subf %50, %38 : vector<16x32xf32>
    %52 = arith.mulf %51, %49 : vector<16x32xf32>
    %53 = arith.mulf %38, %1 : vector<16x32xf32>
    %54 = arith.addf %52, %53 : vector<16x32xf32>
    %cst_28 = arith.constant dense<0.000000e+00> : vector<16x32xf32>
    %55 = tpu.matmul %0, %54, %cst_28 {dimension_numbers = #tpu.dot_dimension_numbers<[1], [0], [0], [1], [0, 0, 1, 1], [], []>} : vector<16x16xf32>, vector<16x32xf32>, vector<16x32xf32> -> vector<16x32xf32>
    %c1 = arith.constant 1 : index
    %c0_29 = arith.constant 0 : index
    %c0_30 = arith.constant 0 : index
    %56 = vector.load %arg3[%c1, %c0_29, %c0_30] : memref<3x4x32xf32, #tpu.memory_space<vmem>>, vector<1x4x32xf32>
    %57 = vector.shape_cast %56 : vector<1x4x32xf32> to vector<4x32xf32>
    %c1_31 = arith.constant 1 : index
    %c0_32 = arith.constant 0 : index
    %c0_33 = arith.constant 0 : index
    %58 = vector.load %arg2[%c1_31, %c0_32, %c0_33] : memref<3x192x32xf32, #tpu.memory_space<vmem>>, vector<1x32x32xf32>
    %59 = vector.shape_cast %58 : vector<1x32x32xf32> to vector<32x32xf32>
    %c1_34 = arith.constant 1 : index
    %c32_35 = arith.constant 32 : index
    %c0_36 = arith.constant 0 : index
    %60 = vector.load %arg2[%c1_34, %c32_35, %c0_36] : memref<3x192x32xf32, #tpu.memory_space<vmem>>, vector<1x32x32xf32>
    %61 = vector.shape_cast %60 : vector<1x32x32xf32> to vector<32x32xf32>
    %c1_37 = arith.constant 1 : index
    %c64_38 = arith.constant 64 : index
    %c0_39 = arith.constant 0 : index
    %62 = vector.load %arg2[%c1_37, %c64_38, %c0_39] : memref<3x192x32xf32, #tpu.memory_space<vmem>>, vector<1x32x32xf32>
    %63 = vector.shape_cast %62 : vector<1x32x32xf32> to vector<32x32xf32>
    %c1_40 = arith.constant 1 : index
    %c96_41 = arith.constant 96 : index
    %c0_42 = arith.constant 0 : index
    %64 = vector.load %arg2[%c1_40, %c96_41, %c0_42] : memref<3x192x32xf32, #tpu.memory_space<vmem>>, vector<1x32x32xf32>
    %65 = vector.shape_cast %64 : vector<1x32x32xf32> to vector<32x32xf32>
    %c1_43 = arith.constant 1 : index
    %c128_44 = arith.constant 128 : index
    %c0_45 = arith.constant 0 : index
    %66 = vector.load %arg2[%c1_43, %c128_44, %c0_45] : memref<3x192x32xf32, #tpu.memory_space<vmem>>, vector<1x32x32xf32>
    %67 = vector.shape_cast %66 : vector<1x32x32xf32> to vector<32x32xf32>
    %c1_46 = arith.constant 1 : index
    %c160_47 = arith.constant 160 : index
    %c0_48 = arith.constant 0 : index
    %68 = vector.load %arg2[%c1_46, %c160_47, %c0_48] : memref<3x192x32xf32, #tpu.memory_space<vmem>>, vector<1x32x32xf32>
    %69 = vector.shape_cast %68 : vector<1x32x32xf32> to vector<32x32xf32>
    %cst_49 = arith.constant dense<0.000000e+00> : vector<16x32xf32>
    %70 = tpu.matmul %55, %59, %cst_49 {dimension_numbers = #tpu.dot_dimension_numbers<[1], [0], [0], [1], [0, 0, 1, 1], [], []>} : vector<16x32xf32>, vector<32x32xf32>, vector<16x32xf32> -> vector<16x32xf32>
    %cst_50 = arith.constant dense<0.000000e+00> : vector<16x32xf32>
    %71 = tpu.matmul %54, %65, %cst_50 {dimension_numbers = #tpu.dot_dimension_numbers<[1], [0], [0], [1], [0, 0, 1, 1], [], []>} : vector<16x32xf32>, vector<32x32xf32>, vector<16x32xf32> -> vector<16x32xf32>
    %72 = arith.addf %70, %71 : vector<16x32xf32>
    %73 = vector.extract_strided_slice %57 {offsets = [0, 0], sizes = [1, 32], strides = [1, 1]} : vector<4x32xf32> to vector<1x32xf32>
    %74 = vector.broadcast %73 : vector<1x32xf32> to vector<16x32xf32>
    %75 = arith.addf %72, %74 : vector<16x32xf32>
    %76 = arith.negf %75 : vector<16x32xf32>
    %77 = math.exp %76 : vector<16x32xf32>
    %cst_51 = arith.constant 1.000000e+00 : f32
    %78 = vector.broadcast %cst_51 : f32 to vector<16x32xf32>
    %79 = arith.addf %78, %77 : vector<16x32xf32>
    %80 = arith.divf %78, %79 : vector<16x32xf32>
    %cst_52 = arith.constant dense<0.000000e+00> : vector<16x32xf32>
    %81 = tpu.matmul %55, %61, %cst_52 {dimension_numbers = #tpu.dot_dimension_numbers<[1], [0], [0], [1], [0, 0, 1, 1], [], []>} : vector<16x32xf32>, vector<32x32xf32>, vector<16x32xf32> -> vector<16x32xf32>
    %cst_53 = arith.constant dense<0.000000e+00> : vector<16x32xf32>
    %82 = tpu.matmul %54, %67, %cst_53 {dimension_numbers = #tpu.dot_dimension_numbers<[1], [0], [0], [1], [0, 0, 1, 1], [], []>} : vector<16x32xf32>, vector<32x32xf32>, vector<16x32xf32> -> vector<16x32xf32>
    %83 = arith.addf %81, %82 : vector<16x32xf32>
    %84 = vector.extract_strided_slice %57 {offsets = [1, 0], sizes = [1, 32], strides = [1, 1]} : vector<4x32xf32> to vector<1x32xf32>
    %85 = vector.broadcast %84 : vector<1x32xf32> to vector<16x32xf32>
    %86 = arith.addf %83, %85 : vector<16x32xf32>
    %87 = arith.negf %86 : vector<16x32xf32>
    %88 = math.exp %87 : vector<16x32xf32>
    %cst_54 = arith.constant 1.000000e+00 : f32
    %89 = vector.broadcast %cst_54 : f32 to vector<16x32xf32>
    %90 = arith.addf %89, %88 : vector<16x32xf32>
    %91 = arith.divf %89, %90 : vector<16x32xf32>
    %cst_55 = arith.constant dense<0.000000e+00> : vector<16x32xf32>
    %92 = tpu.matmul %55, %63, %cst_55 {dimension_numbers = #tpu.dot_dimension_numbers<[1], [0], [0], [1], [0, 0, 1, 1], [], []>} : vector<16x32xf32>, vector<32x32xf32>, vector<16x32xf32> -> vector<16x32xf32>
    %93 = vector.extract_strided_slice %57 {offsets = [2, 0], sizes = [1, 32], strides = [1, 1]} : vector<4x32xf32> to vector<1x32xf32>
    %94 = vector.broadcast %93 : vector<1x32xf32> to vector<16x32xf32>
    %95 = arith.addf %92, %94 : vector<16x32xf32>
    %cst_56 = arith.constant dense<0.000000e+00> : vector<16x32xf32>
    %96 = tpu.matmul %54, %69, %cst_56 {dimension_numbers = #tpu.dot_dimension_numbers<[1], [0], [0], [1], [0, 0, 1, 1], [], []>} : vector<16x32xf32>, vector<32x32xf32>, vector<16x32xf32> -> vector<16x32xf32>
    %97 = vector.extract_strided_slice %57 {offsets = [3, 0], sizes = [1, 32], strides = [1, 1]} : vector<4x32xf32> to vector<1x32xf32>
    %98 = vector.broadcast %97 : vector<1x32xf32> to vector<16x32xf32>
    %99 = arith.addf %96, %98 : vector<16x32xf32>
    %100 = arith.mulf %80, %99 : vector<16x32xf32>
    %101 = arith.addf %95, %100 : vector<16x32xf32>
    %102 = math.tanh %101 : vector<16x32xf32>
    %cst_57 = arith.constant 1.000000e+00 : f32
    %103 = vector.broadcast %cst_57 : f32 to vector<16x32xf32>
    %104 = arith.subf %103, %91 : vector<16x32xf32>
    %105 = arith.mulf %104, %102 : vector<16x32xf32>
    %106 = arith.mulf %91, %54 : vector<16x32xf32>
    %107 = arith.addf %105, %106 : vector<16x32xf32>
    %cst_58 = arith.constant dense<0.000000e+00> : vector<16x32xf32>
    %108 = tpu.matmul %0, %107, %cst_58 {dimension_numbers = #tpu.dot_dimension_numbers<[1], [0], [0], [1], [0, 0, 1, 1], [], []>} : vector<16x16xf32>, vector<16x32xf32>, vector<16x32xf32> -> vector<16x32xf32>
    %c2 = arith.constant 2 : index
    %c0_59 = arith.constant 0 : index
    %c0_60 = arith.constant 0 : index
    %109 = vector.load %arg3[%c2, %c0_59, %c0_60] : memref<3x4x32xf32, #tpu.memory_space<vmem>>, vector<1x4x32xf32>
    %110 = vector.shape_cast %109 : vector<1x4x32xf32> to vector<4x32xf32>
    %c2_61 = arith.constant 2 : index
    %c0_62 = arith.constant 0 : index
    %c0_63 = arith.constant 0 : index
    %111 = vector.load %arg2[%c2_61, %c0_62, %c0_63] : memref<3x192x32xf32, #tpu.memory_space<vmem>>, vector<1x32x32xf32>
    %112 = vector.shape_cast %111 : vector<1x32x32xf32> to vector<32x32xf32>
    %c2_64 = arith.constant 2 : index
    %c32_65 = arith.constant 32 : index
    %c0_66 = arith.constant 0 : index
    %113 = vector.load %arg2[%c2_64, %c32_65, %c0_66] : memref<3x192x32xf32, #tpu.memory_space<vmem>>, vector<1x32x32xf32>
    %114 = vector.shape_cast %113 : vector<1x32x32xf32> to vector<32x32xf32>
    %c2_67 = arith.constant 2 : index
    %c64_68 = arith.constant 64 : index
    %c0_69 = arith.constant 0 : index
    %115 = vector.load %arg2[%c2_67, %c64_68, %c0_69] : memref<3x192x32xf32, #tpu.memory_space<vmem>>, vector<1x32x32xf32>
    %116 = vector.shape_cast %115 : vector<1x32x32xf32> to vector<32x32xf32>
    %c2_70 = arith.constant 2 : index
    %c96_71 = arith.constant 96 : index
    %c0_72 = arith.constant 0 : index
    %117 = vector.load %arg2[%c2_70, %c96_71, %c0_72] : memref<3x192x32xf32, #tpu.memory_space<vmem>>, vector<1x32x32xf32>
    %118 = vector.shape_cast %117 : vector<1x32x32xf32> to vector<32x32xf32>
    %c2_73 = arith.constant 2 : index
    %c128_74 = arith.constant 128 : index
    %c0_75 = arith.constant 0 : index
    %119 = vector.load %arg2[%c2_73, %c128_74, %c0_75] : memref<3x192x32xf32, #tpu.memory_space<vmem>>, vector<1x32x32xf32>
    %120 = vector.shape_cast %119 : vector<1x32x32xf32> to vector<32x32xf32>
    %c2_76 = arith.constant 2 : index
    %c160_77 = arith.constant 160 : index
    %c0_78 = arith.constant 0 : index
    %121 = vector.load %arg2[%c2_76, %c160_77, %c0_78] : memref<3x192x32xf32, #tpu.memory_space<vmem>>, vector<1x32x32xf32>
    %122 = vector.shape_cast %121 : vector<1x32x32xf32> to vector<32x32xf32>
    %cst_79 = arith.constant dense<0.000000e+00> : vector<16x32xf32>
    %123 = tpu.matmul %108, %112, %cst_79 {dimension_numbers = #tpu.dot_dimension_numbers<[1], [0], [0], [1], [0, 0, 1, 1], [], []>} : vector<16x32xf32>, vector<32x32xf32>, vector<16x32xf32> -> vector<16x32xf32>
    %cst_80 = arith.constant dense<0.000000e+00> : vector<16x32xf32>
    %124 = tpu.matmul %107, %118, %cst_80 {dimension_numbers = #tpu.dot_dimension_numbers<[1], [0], [0], [1], [0, 0, 1, 1], [], []>} : vector<16x32xf32>, vector<32x32xf32>, vector<16x32xf32> -> vector<16x32xf32>
    %125 = arith.addf %123, %124 : vector<16x32xf32>
    %126 = vector.extract_strided_slice %110 {offsets = [0, 0], sizes = [1, 32], strides = [1, 1]} : vector<4x32xf32> to vector<1x32xf32>
    %127 = vector.broadcast %126 : vector<1x32xf32> to vector<16x32xf32>
    %128 = arith.addf %125, %127 : vector<16x32xf32>
    %129 = arith.negf %128 : vector<16x32xf32>
    %130 = math.exp %129 : vector<16x32xf32>
    %cst_81 = arith.constant 1.000000e+00 : f32
    %131 = vector.broadcast %cst_81 : f32 to vector<16x32xf32>
    %132 = arith.addf %131, %130 : vector<16x32xf32>
    %133 = arith.divf %131, %132 : vector<16x32xf32>
    %cst_82 = arith.constant dense<0.000000e+00> : vector<16x32xf32>
    %134 = tpu.matmul %108, %114, %cst_82 {dimension_numbers = #tpu.dot_dimension_numbers<[1], [0], [0], [1], [0, 0, 1, 1], [], []>} : vector<16x32xf32>, vector<32x32xf32>, vector<16x32xf32> -> vector<16x32xf32>
    %cst_83 = arith.constant dense<0.000000e+00> : vector<16x32xf32>
    %135 = tpu.matmul %107, %120, %cst_83 {dimension_numbers = #tpu.dot_dimension_numbers<[1], [0], [0], [1], [0, 0, 1, 1], [], []>} : vector<16x32xf32>, vector<32x32xf32>, vector<16x32xf32> -> vector<16x32xf32>
    %136 = arith.addf %134, %135 : vector<16x32xf32>
    %137 = vector.extract_strided_slice %110 {offsets = [1, 0], sizes = [1, 32], strides = [1, 1]} : vector<4x32xf32> to vector<1x32xf32>
    %138 = vector.broadcast %137 : vector<1x32xf32> to vector<16x32xf32>
    %139 = arith.addf %136, %138 : vector<16x32xf32>
    %140 = arith.negf %139 : vector<16x32xf32>
    %141 = math.exp %140 : vector<16x32xf32>
    %cst_84 = arith.constant 1.000000e+00 : f32
    %142 = vector.broadcast %cst_84 : f32 to vector<16x32xf32>
    %143 = arith.addf %142, %141 : vector<16x32xf32>
    %144 = arith.divf %142, %143 : vector<16x32xf32>
    %cst_85 = arith.constant dense<0.000000e+00> : vector<16x32xf32>
    %145 = tpu.matmul %108, %116, %cst_85 {dimension_numbers = #tpu.dot_dimension_numbers<[1], [0], [0], [1], [0, 0, 1, 1], [], []>} : vector<16x32xf32>, vector<32x32xf32>, vector<16x32xf32> -> vector<16x32xf32>
    %146 = vector.extract_strided_slice %110 {offsets = [2, 0], sizes = [1, 32], strides = [1, 1]} : vector<4x32xf32> to vector<1x32xf32>
    %147 = vector.broadcast %146 : vector<1x32xf32> to vector<16x32xf32>
    %148 = arith.addf %145, %147 : vector<16x32xf32>
    %cst_86 = arith.constant dense<0.000000e+00> : vector<16x32xf32>
    %149 = tpu.matmul %107, %122, %cst_86 {dimension_numbers = #tpu.dot_dimension_numbers<[1], [0], [0], [1], [0, 0, 1, 1], [], []>} : vector<16x32xf32>, vector<32x32xf32>, vector<16x32xf32> -> vector<16x32xf32>
    %150 = vector.extract_strided_slice %110 {offsets = [3, 0], sizes = [1, 32], strides = [1, 1]} : vector<4x32xf32> to vector<1x32xf32>
    %151 = vector.broadcast %150 : vector<1x32xf32> to vector<16x32xf32>
    %152 = arith.addf %149, %151 : vector<16x32xf32>
    %153 = arith.mulf %133, %152 : vector<16x32xf32>
    %154 = arith.addf %148, %153 : vector<16x32xf32>
    %155 = math.tanh %154 : vector<16x32xf32>
    %cst_87 = arith.constant 1.000000e+00 : f32
    %156 = vector.broadcast %cst_87 : f32 to vector<16x32xf32>
    %157 = arith.subf %156, %144 : vector<16x32xf32>
    %158 = arith.mulf %157, %155 : vector<16x32xf32>
    %159 = arith.mulf %144, %107 : vector<16x32xf32>
    %160 = arith.addf %158, %159 : vector<16x32xf32>
    %c0_88 = arith.constant 0 : index
    %c0_89 = arith.constant 0 : index
    %161 = vector.load %arg4[%c0_88, %c0_89] : memref<16x32xf32, #tpu.memory_space<vmem>>, vector<16x32xf32>
    tpu.vector_store %arg4[%c0_88, %c0_89], %160 {strides = array<i32>} : memref<16x32xf32, #tpu.memory_space<vmem>>, vector<16x32xf32>,
    return
  }
}

</mosaic_0001>

<llo_original>
// kernel: tpu_custom_call.1
$region0: #{tpu_custom_call.1}
  #allocation0 [shape = 'u32[]', space=smem, size = 0x4, offset = 0x4, fixed_abs, tag = 'smem constant byte address 0x4 - core index']
  #allocation1 [shape = 'u32[144,128]{1,0:T(1,128)}', space=vmem, size = 0x12000, scoped, tag = 'internal scratch']
  %s0 = inlined_call_operand.vmem [shape: f32[16,32], index: 0, kind: input, shape index: {}]
  %s1 = inlined_call_operand.vmem [shape: f32[16,16], index: 1, kind: input, shape index: {}]
  %s2 = inlined_call_operand.vmem [shape: f32[3,192,32], index: 2, kind: input, shape index: {}]
  %s3 = inlined_call_operand.vmem [shape: f32[3,4,32], index: 3, kind: input, shape index: {}]
  %s4 = inlined_call_operand.hbm [shape: f32[16,32], index: 4, kind: output, shape index: {}]
  %s5 = sld [smem:[#allocation0]]
  $region26: #{tpu_custom_call.1} parent=0
    _
  %s7 = ssub.s32 1, %s5
  %s8 = scalar_select 0, %s7, %s5
  $region1: #{tpu_custom_call.1} parent=0
    #allocation2 [shape = 'u8[8192]{0}', space=vmem, size = 0x2000, scoped, tag = 'output window, operand 0, single buffered']
    #allocation3 [shape = 's32[1]{0}', space=sflag, size = 0x4, scoped, tag = 'scoped memory for tpu_custom_call.1']
    %9 = vsyncpa [#allocation3], 0
    // Predicated region
    $region2: #{tpu_custom_call.1} parent=1 // pred_check
      _
    $region3: #{tpu_custom_call.1} parent=1 // pred_check_branch
      %11 = sbr.rel (0) target = $region5
    $region4: #{tpu_custom_call.1} parent=1 // pred_region
      _
    $region5: #{tpu_custom_call.1} parent=1 // pred_fallthru
      _
    // Predicated region
    $region6: #{tpu_custom_call.1} parent=1 // pred_check
      _
    $region7: #{tpu_custom_call.1} parent=1 // pred_check_branch
      %13 = sbr.rel (0) target = $region9
    $region8: #{tpu_custom_call.1} parent=1 // pred_region
      _
    $region9: #{tpu_custom_call.1} parent=1 // pred_fallthru
      _
    // Predicated region
    $region10: #{tpu_custom_call.1} parent=1 // pred_check
      _
    $region11: #{tpu_custom_call.1} parent=1 // pred_check_branch
      %15 = sbr.rel (0) target = $region13
    $region12: #{tpu_custom_call.1} parent=1 // pred_region
      _
    $region13: #{tpu_custom_call.1} parent=1 // pred_fallthru
      _
    // Predicated region
    $region14: #{tpu_custom_call.1} parent=1 // pred_check
      _
    $region15: #{tpu_custom_call.1} parent=1 // pred_check_branch
      %17 = sbr.rel (0) target = $region17
    $region16: #{tpu_custom_call.1} parent=1 // pred_region
      _
    $region17: #{tpu_custom_call.1} parent=1 // pred_fallthru
      _
    %v18 = vld [vmem:[%s1] sm:$0xff]
    %v19 = vld [vmem:[%s1 + $0x8] sm:$0xff]
    %v20 = vld [vmem:[%s0] sm:$0xff]
    %v21 = vld [vmem:[%s0 + $0x8] sm:$0xff]
    %vm22 = vcmask 130048
    %v24 = vsel %vm22, %v18, 0
    %v27 = vsel %vm22, %v19, 0
    %29 = vmatprep.subr.mxu0 0.0
    %30 = vmatpush1.msra.mxu0 0.0
    %31 = vmatprep.subr.mxu0 0.0
    %32 = vmatpush1.msra.mxu0 0.0
    %33 = vmatprep.subr.mxu0 0.0
    %34 = vmatpush1.msra.mxu0 0.0
    %35 = vmatprep.subr.mxu0 0.0
    %36 = vmatpush1.msra.mxu0 0.0
    %37 = vmatprep.subr.mxu0 0.0
    %38 = vmatpush1.msra.mxu0 0.0
    %39 = vmatprep.subr.mxu0 0.0
    %40 = vmatpush1.msra.mxu0 0.0
    %41 = vmatprep.subr.mxu0 0.0
    %42 = vmatpush1.msra.mxu0 0.0
    %43 = vmatprep.subr.mxu0 0.0
    %44 = vmatpush1.msra.mxu0 0.0
    %45 = vmatprep.subr.mxu0 0.0
    %46 = vmatpush1.msra.mxu0 0.0
    %47 = vmatprep.subr.mxu0 0.0
    %48 = vmatpush1.msra.mxu0 0.0
    %49 = vmatprep.subr.mxu0 0.0
    %50 = vmatpush1.msra.mxu0 0.0
    %51 = vmatprep.subr.mxu0 0.0
    %52 = vmatpush1.msra.mxu0 0.0
    %53 = vmatprep.subr.mxu0 0.0
    %54 = vmatpush1.msra.mxu0 0.0
    %55 = vmatprep.subr.mxu0 0.0
    %56 = vmatpush1.msra.mxu0 0.0
    %57 = vmatprep.subr.mxu0 0.0
    %58 = vmatpush1.msra.mxu0 %v21
    %59 = vmatprep.subr.mxu0 0.0
    %60 = vmatpush1.msra.mxu0 %v20
    %61 = vmatprep.subr.mxu0 0.0
    %62 = vmatpush2.msra.mxu0 0.0
    %63 = vmatprep.subr.mxu0 0.0
    %64 = vmatpush2.msra.mxu0 0.0
    %65 = vmatprep.subr.mxu0 0.0
    %66 = vmatpush2.msra.mxu0 0.0
    %67 = vmatprep.subr.mxu0 0.0
    %68 = vmatpush2.msra.mxu0 0.0
    %69 = vmatprep.subr.mxu0 0.0
    %70 = vmatpush2.msra.mxu0 0.0
    %71 = vmatprep.subr.mxu0 0.0
    %72 = vmatpush2.msra.mxu0 0.0
    %73 = vmatprep.subr.mxu0 0.0
    %74 = vmatpush2.msra.mxu0 0.0
    %75 = vmatprep.subr.mxu0 0.0
    %76 = vmatpush2.msra.mxu0 0.0
    %77 = vmatprep.subr.mxu0 0.0
    %78 = vmatpush2.msra.mxu0 0.0
    %79 = vmatprep.subr.mxu0 0.0
    %80 = vmatpush2.msra.mxu0 0.0
    %81 = vmatprep.subr.mxu0 0.0
    %82 = vmatpush2.msra.mxu0 0.0
    %83 = vmatprep.subr.mxu0 0.0
    %84 = vmatpush2.msra.mxu0 0.0
    %85 = vmatprep.subr.mxu0 0.0
    %86 = vmatpush2.msra.mxu0 0.0
    %87 = vmatprep.subr.mxu0 0.0
    %88 = vmatpush2.msra.mxu0 0.0
    %89 = vmatprep.subr.mxu0 0.0
    %90 = vmatpush2.msra.mxu0 0.0
    %91 = vmatprep.subr.mxu0 0.0
    %92 = vmatpush2.msra.mxu0 0.0
    %93 = vmatprep.mubr.f32.mxu0 0.0
    %94 = vmatmul.mubr.f32.gmra.mxu0 %v24
    %v95 = vpop.f32.mrf.mxu0
    %v96 = vadd.f32 0.0, %v95
    %v97 = vpop.f32.mrf.mxu0
    %98 = vmatprep.mubr.f32.mxu0 0.0
    %99 = vmatmul.mubr.f32.gmra.mxu0 %v27
    %v100 = vpop.f32.mrf.mxu0
    %v101 = vadd.f32 0.0, %v100
    %v102 = vpop.f32.mrf.mxu0
    %103 = vdwg.mxu0
    %v104 = vld [vmem:[%s3] sm:$0xf]
    %v105 = vld [vmem:[%s2] sm:$0xff]
    %v106 = vld [vmem:[%s2 + $0x8] sm:$0xff]
    %v107 = vld [vmem:[%s2 + $0x10] sm:$0xff]
    %v108 = vld [vmem:[%s2 + $0x18] sm:$0xff]
    %v109 = vld [vmem:[%s2 + $0x20] sm:$0xff]
    %v110 = vld [vmem:[%s2 + $0x28] sm:$0xff]
    %v111 = vld [vmem:[%s2 + $0x30] sm:$0xff]
    %v112 = vld [vmem:[%s2 + $0x38] sm:$0xff]
    %v113 = vld [vmem:[%s2 + $0x40] sm:$0xff]
    %v114 = vld [vmem:[%s2 + $0x48] sm:$0xff]
    %v115 = vld [vmem:[%s2 + $0x50] sm:$0xff]
    %v116 = vld [vmem:[%s2 + $0x58] sm:$0xff]
    %v117 = vld [vmem:[%s2 + $0x60] sm:$0xff]
    %v118 = vld [vmem:[%s2 + $0x68] sm:$0xff]
    %v119 = vld [vmem:[%s2 + $0x70] sm:$0xff]
    %v120 = vld [vmem:[%s2 + $0x78] sm:$0xff]
    %v121 = vld [vmem:[%s2 + $0x80] sm:$0xff]
    %v122 = vld [vmem:[%s2 + $0x88] sm:$0xff]
    %v123 = vld [vmem:[%s2 + $0x90] sm:$0xff]
    %v124 = vld [vmem:[%s2 + $0x98] sm:$0xff]
    %v125 = vld [vmem:[%s2 + $0xa0] sm:$0xff]
    %v126 = vld [vmem:[%s2 + $0xa8] sm:$0xff]
    %v127 = vld [vmem:[%s2 + $0xb0] sm:$0xff]
    %v128 = vld [vmem:[%s2 + $0xb8] sm:$0xff]
    %vm129 = vcmask 261120
    %v131 = vsel %vm129, %v20, 0
    %v134 = vsel %vm129, %v21, 0
    %136 = vmatprep.subr.mxu0 0.0
    %137 = vmatpush1.msra.mxu0 0.0
    %138 = vmatprep.subr.mxu0 0.0
    %139 = vmatpush1.msra.mxu0 0.0
    %140 = vmatprep.subr.mxu0 0.0
    %141 = vmatpush1.msra.mxu0 0.0
    %142 = vmatprep.subr.mxu0 0.0
    %143 = vmatpush1.msra.mxu0 0.0
    %144 = vmatprep.subr.mxu0 0.0
    %145 = vmatpush1.msra.mxu0 0.0
    %146 = vmatprep.subr.mxu0 0.0
    %147 = vmatpush1.msra.mxu0 0.0
    %148 = vmatprep.subr.mxu0 0.0
    %149 = vmatpush1.msra.mxu0 0.0
    %150 = vmatprep.subr.mxu0 0.0
    %151 = vmatpush1.msra.mxu0 0.0
    %152 = vmatprep.subr.mxu0 0.0
    %153 = vmatpush1.msra.mxu0 0.0
    %154 = vmatprep.subr.mxu0 0.0
    %155 = vmatpush1.msra.mxu0 0.0
    %156 = vmatprep.subr.mxu0 0.0
    %157 = vmatpush1.msra.mxu0 0.0
    %158 = vmatprep.subr.mxu0 0.0
    %159 = vmatpush1.msra.mxu0 0.0
    %160 = vmatprep.subr.mxu0 0.0
    %161 = vmatpush1.msra.mxu0 %v120
    %162 = vmatprep.subr.mxu0 0.0
    %163 = vmatpush1.msra.mxu0 %v119
    %164 = vmatprep.subr.mxu0 0.0
    %165 = vmatpush1.msra.mxu0 %v118
    %166 = vmatprep.subr.mxu0 0.0
    %167 = vmatpush1.msra.mxu0 %v117
    %168 = vmatprep.subr.mxu0 0.0
    %169 = vmatpush2.msra.mxu0 0.0
    %170 = vmatprep.subr.mxu0 0.0
    %171 = vmatpush2.msra.mxu0 0.0
    %172 = vmatprep.subr.mxu0 0.0
    %173 = vmatpush2.msra.mxu0 0.0
    %174 = vmatprep.subr.mxu0 0.0
    %175 = vmatpush2.msra.mxu0 0.0
    %176 = vmatprep.subr.mxu0 0.0
    %177 = vmatpush2.msra.mxu0 0.0
    %178 = vmatprep.subr.mxu0 0.0
    %179 = vmatpush2.msra.mxu0 0.0
    %180 = vmatprep.subr.mxu0 0.0
    %181 = vmatpush2.msra.mxu0 0.0
    %182 = vmatprep.subr.mxu0 0.0
    %183 = vmatpush2.msra.mxu0 0.0
    %184 = vmatprep.subr.mxu0 0.0
    %185 = vmatpush2.msra.mxu0 0.0
    %186 = vmatprep.subr.mxu0 0.0
    %187 = vmatpush2.msra.mxu0 0.0
    %188 = vmatprep.subr.mxu0 0.0
    %189 = vmatpush2.msra.mxu0 0.0
    %190 = vmatprep.subr.mxu0 0.0
    %191 = vmatpush2.msra.mxu0 0.0
    %192 = vmatprep.subr.mxu0 0.0
    %193 = vmatpush2.msra.mxu0 0.0
    %194 = vmatprep.subr.mxu0 0.0
    %195 = vmatpush2.msra.mxu0 0.0
    %196 = vmatprep.subr.mxu0 0.0
    %197 = vmatpush2.msra.mxu0 0.0
    %198 = vmatprep.subr.mxu0 0.0
    %199 = vmatpush2.msra.mxu0 0.0
    %200 = vmatprep.mubr.f32.mxu0 0.0
    %201 = vmatmul.mubr.f32.gmra.mxu0 %v131
    %v202 = vpop.f32.mrf.mxu0
    %v203 = vadd.f32 0.0, %v202
    %v204 = vpop.f32.mrf.mxu0
    %205 = vmatprep.mubr.f32.mxu0 0.0
    %206 = vmatmul.mubr.f32.gmra.mxu0 %v134
    %v207 = vpop.f32.mrf.mxu0
    %v208 = vadd.f32 0.0, %v207
    %v209 = vpop.f32.mrf.mxu0
    %210 = vdwg.mxu0
    %v212 = vsel %vm129, %v96, 0
    %v215 = vsel %vm129, %v101, 0
    %217 = vmatprep.subr.mxu0 0.0
    %218 = vmatpush1.msra.mxu0 0.0
    %219 = vmatprep.subr.mxu0 0.0
    %220 = vmatpush1.msra.mxu0 0.0
    %221 = vmatprep.subr.mxu0 0.0
    %222 = vmatpush1.msra.mxu0 0.0
    %223 = vmatprep.subr.mxu0 0.0
    %224 = vmatpush1.msra.mxu0 0.0
    %225 = vmatprep.subr.mxu0 0.0
    %226 = vmatpush1.msra.mxu0 0.0
    %227 = vmatprep.subr.mxu0 0.0
    %228 = vmatpush1.msra.mxu0 0.0
    %229 = vmatprep.subr.mxu0 0.0
    %230 = vmatpush1.msra.mxu0 0.0
    %231 = vmatprep.subr.mxu0 0.0
    %232 = vmatpush1.msra.mxu0 0.0
    %233 = vmatprep.subr.mxu0 0.0
    %234 = vmatpush1.msra.mxu0 0.0
    %235 = vmatprep.subr.mxu0 0.0
    %236 = vmatpush1.msra.mxu0 0.0
    %237 = vmatprep.subr.mxu0 0.0
    %238 = vmatpush1.msra.mxu0 0.0
    %239 = vmatprep.subr.mxu0 0.0
    %240 = vmatpush1.msra.mxu0 0.0
    %241 = vmatprep.subr.mxu0 0.0
    %242 = vmatpush1.msra.mxu0 %v108
    %243 = vmatprep.subr.mxu0 0.0
    %244 = vmatpush1.msra.mxu0 %v107
    %245 = vmatprep.subr.mxu0 0.0
    %246 = vmatpush1.msra.mxu0 %v106
    %247 = vmatprep.subr.mxu0 0.0
    %248 = vmatpush1.msra.mxu0 %v105
    %249 = vmatprep.subr.mxu0 0.0
    %250 = vmatpush2.msra.mxu0 0.0
    %251 = vmatprep.subr.mxu0 0.0
    %252 = vmatpush2.msra.mxu0 0.0
    %253 = vmatprep.subr.mxu0 0.0
    %254 = vmatpush2.msra.mxu0 0.0
    %255 = vmatprep.subr.mxu0 0.0
    %256 = vmatpush2.msra.mxu0 0.0
    %257 = vmatprep.subr.mxu0 0.0
    %258 = vmatpush2.msra.mxu0 0.0
    %259 = vmatprep.subr.mxu0 0.0
    %260 = vmatpush2.msra.mxu0 0.0
    %261 = vmatprep.subr.mxu0 0.0
    %262 = vmatpush2.msra.mxu0 0.0
    %263 = vmatprep.subr.mxu0 0.0
    %264 = vmatpush2.msra.mxu0 0.0
    %265 = vmatprep.subr.mxu0 0.0
    %266 = vmatpush2.msra.mxu0 0.0
    %267 = vmatprep.subr.mxu0 0.0
    %268 = vmatpush2.msra.mxu0 0.0
    %269 = vmatprep.subr.mxu0 0.0
    %270 = vmatpush2.msra.mxu0 0.0
    %271 = vmatprep.subr.mxu0 0.0
    %272 = vmatpush2.msra.mxu0 0.0
    %273 = vmatprep.subr.mxu0 0.0
    %274 = vmatpush2.msra.mxu0 0.0
    %275 = vmatprep.subr.mxu0 0.0
    %276 = vmatpush2.msra.mxu0 0.0
    %277 = vmatprep.subr.mxu0 0.0
    %278 = vmatpush2.msra.mxu0 0.0
    %279 = vmatprep.subr.mxu0 0.0
    %280 = vmatpush2.msra.mxu0 0.0
    %281 = vmatprep.mubr.f32.mxu0 0.0
    %282 = vmatmul.mubr.f32.gmra.mxu0 %v212
    %v283 = vpop.f32.mrf.mxu0
    %v284 = vadd.f32 %v203, %v283
    %v285 = vpop.f32.mrf.mxu0
    %286 = vmatprep.mubr.f32.mxu0 0.0
    %287 = vmatmul.mubr.f32.gmra.mxu0 %v215
    %v288 = vpop.f32.mrf.mxu0
    %v289 = vadd.f32 %v208, %v288
    %v290 = vpop.f32.mrf.mxu0
    %291 = vdwg.mxu0
    %v292 = vlaneseq
    %v293 = vshrl.u32 %v292, 7
    %v294 = vsub.s32 0, %v293
    %v295 = vrot.slane %v104, %v294
    %v296 = vadd.f32 %v284, %v295
    %v297 = vadd.f32 %v289, %v295
    %v298 = vxor.u32 %v296, 2147483648
    %v299 = vxor.u32 %v297, 2147483648
    %v300 = vmul.f32 %v298, 1.442695
    %v301 = vpow.pop %v300
    %v302 = vmul.f32 %v299, 1.442695
    %v303 = vpow.pop %v302
    %v304 = vadd.f32 %v301, 1.0
    %v305 = vadd.f32 %v303, 1.0
    %v306 = vrcp.pop %v304
    %v307 = vmul.f32 1.0, %v306
    %v308 = vrcp.pop %v305
    %v309 = vmul.f32 1.0, %v308
    %310 = vmatprep.subr.mxu0 0.0
    %311 = vmatpush1.msra.mxu0 0.0
    %312 = vmatprep.subr.mxu0 0.0
    %313 = vmatpush1.msra.mxu0 0.0
    %314 = vmatprep.subr.mxu0 0.0
    %315 = vmatpush1.msra.mxu0 0.0
    %316 = vmatprep.subr.mxu0 0.0
    %317 = vmatpush1.msra.mxu0 0.0
    %318 = vmatprep.subr.mxu0 0.0
    %319 = vmatpush1.msra.mxu0 0.0
    %320 = vmatprep.subr.mxu0 0.0
    %321 = vmatpush1.msra.mxu0 0.0
    %322 = vmatprep.subr.mxu0 0.0
    %323 = vmatpush1.msra.mxu0 0.0
    %324 = vmatprep.subr.mxu0 0.0
    %325 = vmatpush1.msra.mxu0 0.0
    %326 = vmatprep.subr.mxu0 0.0
    %327 = vmatpush1.msra.mxu0 0.0
    %328 = vmatprep.subr.mxu0 0.0
    %329 = vmatpush1.msra.mxu0 0.0
    %330 = vmatprep.subr.mxu0 0.0
    %331 = vmatpush1.msra.mxu0 0.0
    %332 = vmatprep.subr.mxu0 0.0
    %333 = vmatpush1.msra.mxu0 0.0
    %334 = vmatprep.subr.mxu0 0.0
    %335 = vmatpush1.msra.mxu0 %v124
    %336 = vmatprep.subr.mxu0 0.0
    %337 = vmatpush1.msra.mxu0 %v123
    %338 = vmatprep.subr.mxu0 0.0
    %339 = vmatpush1.msra.mxu0 %v122
    %340 = vmatprep.subr.mxu0 0.0
    %341 = vmatpush1.msra.mxu0 %v121
    %342 = vmatprep.subr.mxu0 0.0
    %343 = vmatpush2.msra.mxu0 0.0
    %344 = vmatprep.subr.mxu0 0.0
    %345 = vmatpush2.msra.mxu0 0.0
    %346 = vmatprep.subr.mxu0 0.0
    %347 = vmatpush2.msra.mxu0 0.0
    %348 = vmatprep.subr.mxu0 0.0
    %349 = vmatpush2.msra.mxu0 0.0
    %350 = vmatprep.subr.mxu0 0.0
    %351 = vmatpush2.msra.mxu0 0.0
    %352 = vmatprep.subr.mxu0 0.0
    %353 = vmatpush2.msra.mxu0 0.0
    %354 = vmatprep.subr.mxu0 0.0
    %355 = vmatpush2.msra.mxu0 0.0
    %356 = vmatprep.subr.mxu0 0.0
    %357 = vmatpush2.msra.mxu0 0.0
    %358 = vmatprep.subr.mxu0 0.0
    %359 = vmatpush2.msra.mxu0 0.0
    %360 = vmatprep.subr.mxu0 0.0
    %361 = vmatpush2.msra.mxu0 0.0
    %362 = vmatprep.subr.mxu0 0.0
    %363 = vmatpush2.msra.mxu0 0.0
    %364 = vmatprep.subr.mxu0 0.0
    %365 = vmatpush2.msra.mxu0 0.0
    %366 = vmatprep.subr.mxu0 0.0
    %367 = vmatpush2.msra.mxu0 0.0
    %368 = vmatprep.subr.mxu0 0.0
    %369 = vmatpush2.msra.mxu0 0.0
    %370 = vmatprep.subr.mxu0 0.0
    %371 = vmatpush2.msra.mxu0 0.0
    %372 = vmatprep.subr.mxu0 0.0
    %373 = vmatpush2.msra.mxu0 0.0
    %374 = vmatprep.mubr.f32.mxu0 0.0
    %375 = vmatmul.mubr.f32.gmra.mxu0 %v131
    %v376 = vpop.f32.mrf.mxu0
    %v377 = vadd.f32 0.0, %v376
    %v378 = vpop.f32.mrf.mxu0
    %379 = vmatprep.mubr.f32.mxu0 0.0
    %380 = vmatmul.mubr.f32.gmra.mxu0 %v134
    %v381 = vpop.f32.mrf.mxu0
    %v382 = vadd.f32 0.0, %v381
    %v383 = vpop.f32.mrf.mxu0
    %384 = vdwg.mxu0
    %385 = vmatprep.subr.mxu0 0.0
    %386 = vmatpush1.msra.mxu0 0.0
    %387 = vmatprep.subr.mxu0 0.0
    %388 = vmatpush1.msra.mxu0 0.0
    %389 = vmatprep.subr.mxu0 0.0
    %390 = vmatpush1.msra.mxu0 0.0
    %391 = vmatprep.subr.mxu0 0.0
    %392 = vmatpush1.msra.mxu0 0.0
    %393 = vmatprep.subr.mxu0 0.0
    %394 = vmatpush1.msra.mxu0 0.0
    %395 = vmatprep.subr.mxu0 0.0
    %396 = vmatpush1.msra.mxu0 0.0
    %397 = vmatprep.subr.mxu0 0.0
    %398 = vmatpush1.msra.mxu0 0.0
    %399 = vmatprep.subr.mxu0 0.0
    %400 = vmatpush1.msra.mxu0 0.0
    %401 = vmatprep.subr.mxu0 0.0
    %402 = vmatpush1.msra.mxu0 0.0
    %403 = vmatprep.subr.mxu0 0.0
    %404 = vmatpush1.msra.mxu0 0.0
    %405 = vmatprep.subr.mxu0 0.0
    %406 = vmatpush1.msra.mxu0 0.0
    %407 = vmatprep.subr.mxu0 0.0
    %408 = vmatpush1.msra.mxu0 0.0
    %409 = vmatprep.subr.mxu0 0.0
    %410 = vmatpush1.msra.mxu0 %v112
    %411 = vmatprep.subr.mxu0 0.0
    %412 = vmatpush1.msra.mxu0 %v111
    %413 = vmatprep.subr.mxu0 0.0
    %414 = vmatpush1.msra.mxu0 %v110
    %415 = vmatprep.subr.mxu0 0.0
    %416 = vmatpush1.msra.mxu0 %v109
    %417 = vmatprep.subr.mxu0 0.0
    %418 = vmatpush2.msra.mxu0 0.0
    %419 = vmatprep.subr.mxu0 0.0
    %420 = vmatpush2.msra.mxu0 0.0
    %421 = vmatprep.subr.mxu0 0.0
    %422 = vmatpush2.msra.mxu0 0.0
    %423 = vmatprep.subr.mxu0 0.0
    %424 = vmatpush2.msra.mxu0 0.0
    %425 = vmatprep.subr.mxu0 0.0
    %426 = vmatpush2.msra.mxu0 0.0
    %427 = vmatprep.subr.mxu0 0.0
    %428 = vmatpush2.msra.mxu0 0.0
    %429 = vmatprep.subr.mxu0 0.0
    %430 = vmatpush2.msra.mxu0 0.0
    %431 = vmatprep.subr.mxu0 0.0
    %432 = vmatpush2.msra.mxu0 0.0
    %433 = vmatprep.subr.mxu0 0.0
    %434 = vmatpush2.msra.mxu0 0.0
    %435 = vmatprep.subr.mxu0 0.0
    %436 = vmatpush2.msra.mxu0 0.0
    %437 = vmatprep.subr.mxu0 0.0
    %438 = vmatpush2.msra.mxu0 0.0
    %439 = vmatprep.subr.mxu0 0.0
    %440 = vmatpush2.msra.mxu0 0.0
    %441 = vmatprep.subr.mxu0 0.0
    %442 = vmatpush2.msra.mxu0 0.0
    %443 = vmatprep.subr.mxu0 0.0
    %444 = vmatpush2.msra.mxu0 0.0
    %445 = vmatprep.subr.mxu0 0.0
    %446 = vmatpush2.msra.mxu0 0.0
    %447 = vmatprep.subr.mxu0 0.0
    %448 = vmatpush2.msra.mxu0 0.0
    %449 = vmatprep.mubr.f32.mxu0 0.0
    %450 = vmatmul.mubr.f32.gmra.mxu0 %v212
    %v451 = vpop.f32.mrf.mxu0
    %v452 = vadd.f32 %v377, %v451
    %v453 = vpop.f32.mrf.mxu0
    %454 = vmatprep.mubr.f32.mxu0 0.0
    %455 = vmatmul.mubr.f32.gmra.mxu0 %v215
    %v456 = vpop.f32.mrf.mxu0
    %v457 = vadd.f32 %v382, %v456
    %v458 = vpop.f32.mrf.mxu0
    %459 = vdwg.mxu0
    %v460 = vlaneseq
    %v461 = vshrl.u32 %v460, 7
    %v462 = vsub.s32 1, %v461
    %v463 = vrot.slane %v104, %v462
    %v464 = vadd.f32 %v452, %v463
    %v465 = vadd.f32 %v457, %v463
    %v466 = vxor.u32 %v464, 2147483648
    %v467 = vxor.u32 %v465, 2147483648
    %v468 = vmul.f32 %v466, 1.442695
    %v469 = vpow.pop %v468
    %v470 = vmul.f32 %v467, 1.442695
    %v471 = vpow.pop %v470
    %v472 = vadd.f32 %v469, 1.0
    %v473 = vadd.f32 %v471, 1.0
    %v474 = vrcp.pop %v472
    %v475 = vmul.f32 1.0, %v474
    %v476 = vrcp.pop %v473
    %v477 = vmul.f32 1.0, %v476
    %v478 = vlaneseq
    %v479 = vshrl.u32 %v478, 7
    %v480 = vsub.s32 2, %v479
    %v481 = vrot.slane %v104, %v480
    %482 = vmatprep.subr.mxu0 0.0
    %483 = vmatpush1.msra.mxu0 0.0
    %484 = vmatprep.subr.mxu0 0.0
    %485 = vmatpush1.msra.mxu0 0.0
    %486 = vmatprep.subr.mxu0 0.0
    %487 = vmatpush1.msra.mxu0 0.0
    %488 = vmatprep.subr.mxu0 0.0
    %489 = vmatpush1.msra.mxu0 0.0
    %490 = vmatprep.subr.mxu0 0.0
    %491 = vmatpush1.msra.mxu0 0.0
    %492 = vmatprep.subr.mxu0 0.0
    %493 = vmatpush1.msra.mxu0 0.0
    %494 = vmatprep.subr.mxu0 0.0
    %495 = vmatpush1.msra.mxu0 0.0
    %496 = vmatprep.subr.mxu0 0.0
    %497 = vmatpush1.msra.mxu0 0.0
    %498 = vmatprep.subr.mxu0 0.0
    %499 = vmatpush1.msra.mxu0 0.0
    %500 = vmatprep.subr.mxu0 0.0
    %501 = vmatpush1.msra.mxu0 0.0
    %502 = vmatprep.subr.mxu0 0.0
    %503 = vmatpush1.msra.mxu0 0.0
    %504 = vmatprep.subr.mxu0 0.0
    %505 = vmatpush1.msra.mxu0 0.0
    %506 = vmatprep.subr.mxu0 0.0
    %507 = vmatpush1.msra.mxu0 %v116
    %508 = vmatprep.subr.mxu0 0.0
    %509 = vmatpush1.msra.mxu0 %v115
    %510 = vmatprep.subr.mxu0 0.0
    %511 = vmatpush1.msra.mxu0 %v114
    %512 = vmatprep.subr.mxu0 0.0
    %513 = vmatpush1.msra.mxu0 %v113
    %514 = vmatprep.subr.mxu0 0.0
    %515 = vmatpush2.msra.mxu0 0.0
    %516 = vmatprep.subr.mxu0 0.0
    %517 = vmatpush2.msra.mxu0 0.0
    %518 = vmatprep.subr.mxu0 0.0
    %519 = vmatpush2.msra.mxu0 0.0
    %520 = vmatprep.subr.mxu0 0.0
    %521 = vmatpush2.msra.mxu0 0.0
    %522 = vmatprep.subr.mxu0 0.0
    %523 = vmatpush2.msra.mxu0 0.0
    %524 = vmatprep.subr.mxu0 0.0
    %525 = vmatpush2.msra.mxu0 0.0
    %526 = vmatprep.subr.mxu0 0.0
    %527 = vmatpush2.msra.mxu0 0.0
    %528 = vmatprep.subr.mxu0 0.0
    %529 = vmatpush2.msra.mxu0 0.0
    %530 = vmatprep.subr.mxu0 0.0
    %531 = vmatpush2.msra.mxu0 0.0
    %532 = vmatprep.subr.mxu0 0.0
    %533 = vmatpush2.msra.mxu0 0.0
    %534 = vmatprep.subr.mxu0 0.0
    %535 = vmatpush2.msra.mxu0 0.0
    %536 = vmatprep.subr.mxu0 0.0
    %537 = vmatpush2.msra.mxu0 0.0
    %538 = vmatprep.subr.mxu0 0.0
    %539 = vmatpush2.msra.mxu0 0.0
    %540 = vmatprep.subr.mxu0 0.0
    %541 = vmatpush2.msra.mxu0 0.0
    %542 = vmatprep.subr.mxu0 0.0
    %543 = vmatpush2.msra.mxu0 0.0
    %544 = vmatprep.subr.mxu0 0.0
    %545 = vmatpush2.msra.mxu0 0.0
    %546 = vmatprep.mubr.f32.mxu0 0.0
    %547 = vmatmul.mubr.f32.gmra.mxu0 %v212
    %v548 = vpop.f32.mrf.mxu0
    %v549 = vadd.f32 %v481, %v548
    %v550 = vpop.f32.mrf.mxu0
    %551 = vmatprep.mubr.f32.mxu0 0.0
    %552 = vmatmul.mubr.f32.gmra.mxu0 %v215
    %v553 = vpop.f32.mrf.mxu0
    %v554 = vadd.f32 %v481, %v553
    %v555 = vpop.f32.mrf.mxu0
    %556 = vdwg.mxu0
    %v557 = vlaneseq
    %v558 = vshrl.u32 %v557, 7
    %v559 = vsub.s32 3, %v558
    %v560 = vrot.slane %v104, %v559
    %561 = vmatprep.subr.mxu0 0.0
    %562 = vmatpush1.msra.mxu0 0.0
    %563 = vmatprep.subr.mxu0 0.0
    %564 = vmatpush1.msra.mxu0 0.0
    %565 = vmatprep.subr.mxu0 0.0
    %566 = vmatpush1.msra.mxu0 0.0
    %567 = vmatprep.subr.mxu0 0.0
    %568 = vmatpush1.msra.mxu0 0.0
    %569 = vmatprep.subr.mxu0 0.0
    %570 = vmatpush1.msra.mxu0 0.0
    %571 = vmatprep.subr.mxu0 0.0
    %572 = vmatpush1.msra.mxu0 0.0
    %573 = vmatprep.subr.mxu0 0.0
    %574 = vmatpush1.msra.mxu0 0.0
    %575 = vmatprep.subr.mxu0 0.0
    %576 = vmatpush1.msra.mxu0 0.0
    %577 = vmatprep.subr.mxu0 0.0
    %578 = vmatpush1.msra.mxu0 0.0
    %579 = vmatprep.subr.mxu0 0.0
    %580 = vmatpush1.msra.mxu0 0.0
    %581 = vmatprep.subr.mxu0 0.0
    %582 = vmatpush1.msra.mxu0 0.0
    %583 = vmatprep.subr.mxu0 0.0
    %584 = vmatpush1.msra.mxu0 0.0
    %585 = vmatprep.subr.mxu0 0.0
    %586 = vmatpush1.msra.mxu0 %v128
    %587 = vmatprep.subr.mxu0 0.0
    %588 = vmatpush1.msra.mxu0 %v127
    %589 = vmatprep.subr.mxu0 0.0
    %590 = vmatpush1.msra.mxu0 %v126
    %591 = vmatprep.subr.mxu0 0.0
    %592 = vmatpush1.msra.mxu0 %v125
    %593 = vmatprep.subr.mxu0 0.0
    %594 = vmatpush2.msra.mxu0 0.0
    %595 = vmatprep.subr.mxu0 0.0
    %596 = vmatpush2.msra.mxu0 0.0
    %597 = vmatprep.subr.mxu0 0.0
    %598 = vmatpush2.msra.mxu0 0.0
    %599 = vmatprep.subr.mxu0 0.0
    %600 = vmatpush2.msra.mxu0 0.0
    %601 = vmatprep.subr.mxu0 0.0
    %602 = vmatpush2.msra.mxu0 0.0
    %603 = vmatprep.subr.mxu0 0.0
    %604 = vmatpush2.msra.mxu0 0.0
    %605 = vmatprep.subr.mxu0 0.0
    %606 = vmatpush2.msra.mxu0 0.0
    %607 = vmatprep.subr.mxu0 0.0
    %608 = vmatpush2.msra.mxu0 0.0
    %609 = vmatprep.subr.mxu0 0.0
    %610 = vmatpush2.msra.mxu0 0.0
    %611 = vmatprep.subr.mxu0 0.0
    %612 = vmatpush2.msra.mxu0 0.0
    %613 = vmatprep.subr.mxu0 0.0
    %614 = vmatpush2.msra.mxu0 0.0
    %615 = vmatprep.subr.mxu0 0.0
    %616 = vmatpush2.msra.mxu0 0.0
    %617 = vmatprep.subr.mxu0 0.0
    %618 = vmatpush2.msra.mxu0 0.0
    %619 = vmatprep.subr.mxu0 0.0
    %620 = vmatpush2.msra.mxu0 0.0
    %621 = vmatprep.subr.mxu0 0.0
    %622 = vmatpush2.msra.mxu0 0.0
    %623 = vmatprep.subr.mxu0 0.0
    %624 = vmatpush2.msra.mxu0 0.0
    %625 = vmatprep.mubr.f32.mxu0 0.0
    %626 = vmatmul.mubr.f32.gmra.mxu0 %v131
    %v627 = vpop.f32.mrf.mxu0
    %v628 = vadd.f32 %v560, %v627
    %v629 = vpop.f32.mrf.mxu0
    %630 = vmatprep.mubr.f32.mxu0 0.0
    %631 = vmatmul.mubr.f32.gmra.mxu0 %v134
    %v632 = vpop.f32.mrf.mxu0
    %v633 = vadd.f32 %v560, %v632
    %v634 = vpop.f32.mrf.mxu0
    %635 = vdwg.mxu0
    %v636 = vmul.f32 %v307, %v628
    %v637 = vmul.f32 %v309, %v633
    %v638 = vadd.f32 %v549, %v636
    %v639 = vadd.f32 %v554, %v637
    %v640 = vtanh.pop %v638
    %v641 = vtanh.pop %v639
    %v642 = vsub.f32 1.0, %v475
    %v643 = vsub.f32 1.0, %v477
    %v644 = vmul.f32 %v642, %v640
    %v645 = vmul.f32 %v643, %v641
    %v646 = vmul.f32 %v475, %v20
    %v647 = vmul.f32 %v477, %v21
    %v648 = vadd.f32 %v644, %v646
    %v649 = vadd.f32 %v645, %v647
    %650 = vmatprep.subr.mxu0 0.0
    %651 = vmatpush1.msra.mxu0 0.0
    %652 = vmatprep.subr.mxu0 0.0
    %653 = vmatpush1.msra.mxu0 0.0
    %654 = vmatprep.subr.mxu0 0.0
    %655 = vmatpush1.msra.mxu0 0.0
    %656 = vmatprep.subr.mxu0 0.0
    %657 = vmatpush1.msra.mxu0 0.0
    %658 = vmatprep.subr.mxu0 0.0
    %659 = vmatpush1.msra.mxu0 0.0
    %660 = vmatprep.subr.mxu0 0.0
    %661 = vmatpush1.msra.mxu0 0.0
    %662 = vmatprep.subr.mxu0 0.0
    %663 = vmatpush1.msra.mxu0 0.0
    %664 = vmatprep.subr.mxu0 0.0
    %665 = vmatpush1.msra.mxu0 0.0
    %666 = vmatprep.subr.mxu0 0.0
    %667 = vmatpush1.msra.mxu0 0.0
    %668 = vmatprep.subr.mxu0 0.0
    %669 = vmatpush1.msra.mxu0 0.0
    %670 = vmatprep.subr.mxu0 0.0
    %671 = vmatpush1.msra.mxu0 0.0
    %672 = vmatprep.subr.mxu0 0.0
    %673 = vmatpush1.msra.mxu0 0.0
    %674 = vmatprep.subr.mxu0 0.0
    %675 = vmatpush1.msra.mxu0 0.0
    %676 = vmatprep.subr.mxu0 0.0
    %677 = vmatpush1.msra.mxu0 0.0
    %678 = vmatprep.subr.mxu0 0.0
    %679 = vmatpush1.msra.mxu0 %v649
    %680 = vmatprep.subr.mxu0 0.0
    %681 = vmatpush1.msra.mxu0 %v648
    %682 = vmatprep.subr.mxu0 0.0
    %683 = vmatpush2.msra.mxu0 0.0
    %684 = vmatprep.subr.mxu0 0.0
    %685 = vmatpush2.msra.mxu0 0.0
    %686 = vmatprep.subr.mxu0 0.0
    %687 = vmatpush2.msra.mxu0 0.0
    %688 = vmatprep.subr.mxu0 0.0
    %689 = vmatpush2.msra.mxu0 0.0
    %690 = vmatprep.subr.mxu0 0.0
    %691 = vmatpush2.msra.mxu0 0.0
    %692 = vmatprep.subr.mxu0 0.0
    %693 = vmatpush2.msra.mxu0 0.0
    %694 = vmatprep.subr.mxu0 0.0
    %695 = vmatpush2.msra.mxu0 0.0
    %696 = vmatprep.subr.mxu0 0.0
    %697 = vmatpush2.msra.mxu0 0.0
    %698 = vmatprep.subr.mxu0 0.0
    %699 = vmatpush2.msra.mxu0 0.0
    %700 = vmatprep.subr.mxu0 0.0
    %701 = vmatpush2.msra.mxu0 0.0
    %702 = vmatprep.subr.mxu0 0.0
    %703 = vmatpush2.msra.mxu0 0.0
    %704 = vmatprep.subr.mxu0 0.0
    %705 = vmatpush2.msra.mxu0 0.0
    %706 = vmatprep.subr.mxu0 0.0
    %707 = vmatpush2.msra.mxu0 0.0
    %708 = vmatprep.subr.mxu0 0.0
    %709 = vmatpush2.msra.mxu0 0.0
    %710 = vmatprep.subr.mxu0 0.0
    %711 = vmatpush2.msra.mxu0 0.0
    %712 = vmatprep.subr.mxu0 0.0
    %713 = vmatpush2.msra.mxu0 0.0
    %714 = vmatprep.mubr.f32.mxu0 0.0
    %715 = vmatmul.mubr.f32.gmra.mxu0 %v24
    %v716 = vpop.f32.mrf.mxu0
    %v717 = vadd.f32 0.0, %v716
    %v718 = vpop.f32.mrf.mxu0
    %719 = vmatprep.mubr.f32.mxu0 0.0
    %720 = vmatmul.mubr.f32.gmra.mxu0 %v27
    %v721 = vpop.f32.mrf.mxu0
    %v722 = vadd.f32 0.0, %v721
    %v723 = vpop.f32.mrf.mxu0
    %724 = vdwg.mxu0
    %s725 = scalar_lea.vmem %s3, 4
    %v726 = vld [vmem:[%s725] sm:$0xf]
    %s727 = scalar_lea.vmem %s2, 192
    %v728 = vld [vmem:[%s727] sm:$0xff]
    %v729 = vld [vmem:[%s727 + $0x8] sm:$0xff]
    %v730 = vld [vmem:[%s727 + $0x10] sm:$0xff]
    %v731 = vld [vmem:[%s727 + $0x18] sm:$0xff]
    %v732 = vld [vmem:[%s727 + $0x20] sm:$0xff]
    %v733 = vld [vmem:[%s727 + $0x28] sm:$0xff]
    %v734 = vld [vmem:[%s727 + $0x30] sm:$0xff]
    %v735 = vld [vmem:[%s727 + $0x38] sm:$0xff]
    %v736 = vld [vmem:[%s727 + $0x40] sm:$0xff]
    %v737 = vld [vmem:[%s727 + $0x48] sm:$0xff]
    %v738 = vld [vmem:[%s727 + $0x50] sm:$0xff]
    %v739 = vld [vmem:[%s727 + $0x58] sm:$0xff]
    %v740 = vld [vmem:[%s727 + $0x60] sm:$0xff]
    %v741 = vld [vmem:[%s727 + $0x68] sm:$0xff]
    %v742 = vld [vmem:[%s727 + $0x70] sm:$0xff]
    %v743 = vld [vmem:[%s727 + $0x78] sm:$0xff]
    %v744 = vld [vmem:[%s727 + $0x80] sm:$0xff]
    %v745 = vld [vmem:[%s727 + $0x88] sm:$0xff]
    %v746 = vld [vmem:[%s727 + $0x90] sm:$0xff]
    %v747 = vld [vmem:[%s727 + $0x98] sm:$0xff]
    %v748 = vld [vmem:[%s727 + $0xa0] sm:$0xff]
    %v749 = vld [vmem:[%s727 + $0xa8] sm:$0xff]
    %v750 = vld [vmem:[%s727 + $0xb0] sm:$0xff]
    %v751 = vld [vmem:[%s727 + $0xb8] sm:$0xff]
    %v753 = vsel %vm129, %v648, 0
    %v756 = vsel %vm129, %v649, 0
    %758 = vmatprep.subr.mxu0 0.0
    %759 = vmatpush1.msra.mxu0 0.0
    %760 = vmatprep.subr.mxu0 0.0
    %761 = vmatpush1.msra.mxu0 0.0
    %762 = vmatprep.subr.mxu0 0.0
    %763 = vmatpush1.msra.mxu0 0.0
    %764 = vmatprep.subr.mxu0 0.0
    %765 = vmatpush1.msra.mxu0 0.0
    %766 = vmatprep.subr.mxu0 0.0
    %767 = vmatpush1.msra.mxu0 0.0
    %768 = vmatprep.subr.mxu0 0.0
    %769 = vmatpush1.msra.mxu0 0.0
    %770 = vmatprep.subr.mxu0 0.0
    %771 = vmatpush1.msra.mxu0 0.0
    %772 = vmatprep.subr.mxu0 0.0
    %773 = vmatpush1.msra.mxu0 0.0
    %774 = vmatprep.subr.mxu0 0.0
    %775 = vmatpush1.msra.mxu0 0.0
    %776 = vmatprep.subr.mxu0 0.0
    %777 = vmatpush1.msra.mxu0 0.0
    %778 = vmatprep.subr.mxu0 0.0
    %779 = vmatpush1.msra.mxu0 0.0
    %780 = vmatprep.subr.mxu0 0.0
    %781 = vmatpush1.msra.mxu0 0.0
    %782 = vmatprep.subr.mxu0 0.0
    %783 = vmatpush1.msra.mxu0 %v743
    %784 = vmatprep.subr.mxu0 0.0
    %785 = vmatpush1.msra.mxu0 %v742
    %786 = vmatprep.subr.mxu0 0.0
    %787 = vmatpush1.msra.mxu0 %v741
    %788 = vmatprep.subr.mxu0 0.0
    %789 = vmatpush1.msra.mxu0 %v740
    %790 = vmatprep.subr.mxu0 0.0
    %791 = vmatpush2.msra.mxu0 0.0
    %792 = vmatprep.subr.mxu0 0.0
    %793 = vmatpush2.msra.mxu0 0.0
    %794 = vmatprep.subr.mxu0 0.0
    %795 = vmatpush2.msra.mxu0 0.0
    %796 = vmatprep.subr.mxu0 0.0
    %797 = vmatpush2.msra.mxu0 0.0
    %798 = vmatprep.subr.mxu0 0.0
    %799 = vmatpush2.msra.mxu0 0.0
    %800 = vmatprep.subr.mxu0 0.0
    %801 = vmatpush2.msra.mxu0 0.0
    %802 = vmatprep.subr.mxu0 0.0
    %803 = vmatpush2.msra.mxu0 0.0
    %804 = vmatprep.subr.mxu0 0.0
    %805 = vmatpush2.msra.mxu0 0.0
    %806 = vmatprep.subr.mxu0 0.0
    %807 = vmatpush2.msra.mxu0 0.0
    %808 = vmatprep.subr.mxu0 0.0
    %809 = vmatpush2.msra.mxu0 0.0
    %810 = vmatprep.subr.mxu0 0.0
    %811 = vmatpush2.msra.mxu0 0.0
    %812 = vmatprep.subr.mxu0 0.0
    %813 = vmatpush2.msra.mxu0 0.0
    %814 = vmatprep.subr.mxu0 0.0
    %815 = vmatpush2.msra.mxu0 0.0
    %816 = vmatprep.subr.mxu0 0.0
    %817 = vmatpush2.msra.mxu0 0.0
    %818 = vmatprep.subr.mxu0 0.0
    %819 = vmatpush2.msra.mxu0 0.0
    %820 = vmatprep.subr.mxu0 0.0
    %821 = vmatpush2.msra.mxu0 0.0
    %822 = vmatprep.mubr.f32.mxu0 0.0
    %823 = vmatmul.mubr.f32.gmra.mxu0 %v753
    %v824 = vpop.f32.mrf.mxu0
    %v825 = vadd.f32 0.0, %v824
    %v826 = vpop.f32.mrf.mxu0
    %827 = vmatprep.mubr.f32.mxu0 0.0
    %828 = vmatmul.mubr.f32.gmra.mxu0 %v756
    %v829 = vpop.f32.mrf.mxu0
    %v830 = vadd.f32 0.0, %v829
    %v831 = vpop.f32.mrf.mxu0
    %832 = vdwg.mxu0
    %v834 = vsel %vm129, %v717, 0
    %v837 = vsel %vm129, %v722, 0
    %839 = vmatprep.subr.mxu0 0.0
    %840 = vmatpush1.msra.mxu0 0.0
    %841 = vmatprep.subr.mxu0 0.0
    %842 = vmatpush1.msra.mxu0 0.0
    %843 = vmatprep.subr.mxu0 0.0
    %844 = vmatpush1.msra.mxu0 0.0
    %845 = vmatprep.subr.mxu0 0.0
    %846 = vmatpush1.msra.mxu0 0.0
    %847 = vmatprep.subr.mxu0 0.0
    %848 = vmatpush1.msra.mxu0 0.0
    %849 = vmatprep.subr.mxu0 0.0
    %850 = vmatpush1.msra.mxu0 0.0
    %851 = vmatprep.subr.mxu0 0.0
    %852 = vmatpush1.msra.mxu0 0.0
    %853 = vmatprep.subr.mxu0 0.0
    %854 = vmatpush1.msra.mxu0 0.0
    %855 = vmatprep.subr.mxu0 0.0
    %856 = vmatpush1.msra.mxu0 0.0
    %857 = vmatprep.subr.mxu0 0.0
    %858 = vmatpush1.msra.mxu0 0.0
    %859 = vmatprep.subr.mxu0 0.0
    %860 = vmatpush1.msra.mxu0 0.0
    %861 = vmatprep.subr.mxu0 0.0
    %862 = vmatpush1.msra.mxu0 0.0
    %863 = vmatprep.subr.mxu0 0.0
    %864 = vmatpush1.msra.mxu0 %v731
    %865 = vmatprep.subr.mxu0 0.0
    %866 = vmatpush1.msra.mxu0 %v730
    %867 = vmatprep.subr.mxu0 0.0
    %868 = vmatpush1.msra.mxu0 %v729
    %869 = vmatprep.subr.mxu0 0.0
    %870 = vmatpush1.msra.mxu0 %v728
    %871 = vmatprep.subr.mxu0 0.0
    %872 = vmatpush2.msra.mxu0 0.0
    %873 = vmatprep.subr.mxu0 0.0
    %874 = vmatpush2.msra.mxu0 0.0
    %875 = vmatprep.subr.mxu0 0.0
    %876 = vmatpush2.msra.mxu0 0.0
    %877 = vmatprep.subr.mxu0 0.0
    %878 = vmatpush2.msra.mxu0 0.0
    %879 = vmatprep.subr.mxu0 0.0
    %880 = vmatpush2.msra.mxu0 0.0
    %881 = vmatprep.subr.mxu0 0.0
    %882 = vmatpush2.msra.mxu0 0.0
    %883 = vmatprep.subr.mxu0 0.0
    %884 = vmatpush2.msra.mxu0 0.0
    %885 = vmatprep.subr.mxu0 0.0
    %886 = vmatpush2.msra.mxu0 0.0
    %887 = vmatprep.subr.mxu0 0.0
    %888 = vmatpush2.msra.mxu0 0.0
    %889 = vmatprep.subr.mxu0 0.0
    %890 = vmatpush2.msra.mxu0 0.0
    %891 = vmatprep.subr.mxu0 0.0
    %892 = vmatpush2.msra.mxu0 0.0
    %893 = vmatprep.subr.mxu0 0.0
    %894 = vmatpush2.msra.mxu0 0.0
    %895 = vmatprep.subr.mxu0 0.0
    %896 = vmatpush2.msra.mxu0 0.0
    %897 = vmatprep.subr.mxu0 0.0
    %898 = vmatpush2.msra.mxu0 0.0
    %899 = vmatprep.subr.mxu0 0.0
    %900 = vmatpush2.msra.mxu0 0.0
    %901 = vmatprep.subr.mxu0 0.0
    %902 = vmatpush2.msra.mxu0 0.0
    %903 = vmatprep.mubr.f32.mxu0 0.0
    %904 = vmatmul.mubr.f32.gmra.mxu0 %v834
    %v905 = vpop.f32.mrf.mxu0
    %v906 = vadd.f32 %v825, %v905
    %v907 = vpop.f32.mrf.mxu0
    %908 = vmatprep.mubr.f32.mxu0 0.0
    %909 = vmatmul.mubr.f32.gmra.mxu0 %v837
    %v910 = vpop.f32.mrf.mxu0
    %v911 = vadd.f32 %v830, %v910
    %v912 = vpop.f32.mrf.mxu0
    %913 = vdwg.mxu0
    %v914 = vlaneseq
    %v915 = vshrl.u32 %v914, 7
    %v916 = vsub.s32 0, %v915
    %v917 = vrot.slane %v726, %v916
    %v918 = vadd.f32 %v906, %v917
    %v919 = vadd.f32 %v911, %v917
    %v920 = vxor.u32 %v918, 2147483648
    %v921 = vxor.u32 %v919, 2147483648
    %v922 = vmul.f32 %v920, 1.442695
    %v923 = vpow.pop %v922
    %v924 = vmul.f32 %v921, 1.442695
    %v925 = vpow.pop %v924
    %v926 = vadd.f32 %v923, 1.0
    %v927 = vadd.f32 %v925, 1.0
    %v928 = vrcp.pop %v926
    %v929 = vmul.f32 1.0, %v928
    %v930 = vrcp.pop %v927
    %v931 = vmul.f32 1.0, %v930
    %932 = vmatprep.subr.mxu0 0.0
    %933 = vmatpush1.msra.mxu0 0.0
    %934 = vmatprep.subr.mxu0 0.0
    %935 = vmatpush1.msra.mxu0 0.0
    %936 = vmatprep.subr.mxu0 0.0
    %937 = vmatpush1.msra.mxu0 0.0
    %938 = vmatprep.subr.mxu0 0.0
    %939 = vmatpush1.msra.mxu0 0.0
    %940 = vmatprep.subr.mxu0 0.0
    %941 = vmatpush1.msra.mxu0 0.0
    %942 = vmatprep.subr.mxu0 0.0
    %943 = vmatpush1.msra.mxu0 0.0
    %944 = vmatprep.subr.mxu0 0.0
    %945 = vmatpush1.msra.mxu0 0.0
    %946 = vmatprep.subr.mxu0 0.0
    %947 = vmatpush1.msra.mxu0 0.0
    %948 = vmatprep.subr.mxu0 0.0
    %949 = vmatpush1.msra.mxu0 0.0
    %950 = vmatprep.subr.mxu0 0.0
    %951 = vmatpush1.msra.mxu0 0.0
    %952 = vmatprep.subr.mxu0 0.0
    %953 = vmatpush1.msra.mxu0 0.0
    %954 = vmatprep.subr.mxu0 0.0
    %955 = vmatpush1.msra.mxu0 0.0
    %956 = vmatprep.subr.mxu0 0.0
    %957 = vmatpush1.msra.mxu0 %v747
    %958 = vmatprep.subr.mxu0 0.0
    %959 = vmatpush1.msra.mxu0 %v746
    %960 = vmatprep.subr.mxu0 0.0
    %961 = vmatpush1.msra.mxu0 %v745
    %962 = vmatprep.subr.mxu0 0.0
    %963 = vmatpush1.msra.mxu0 %v744
    %964 = vmatprep.subr.mxu0 0.0
    %965 = vmatpush2.msra.mxu0 0.0
    %966 = vmatprep.subr.mxu0 0.0
    %967 = vmatpush2.msra.mxu0 0.0
    %968 = vmatprep.subr.mxu0 0.0
    %969 = vmatpush2.msra.mxu0 0.0
    %970 = vmatprep.subr.mxu0 0.0
    %971 = vmatpush2.msra.mxu0 0.0
    %972 = vmatprep.subr.mxu0 0.0
    %973 = vmatpush2.msra.mxu0 0.0
    %974 = vmatprep.subr.mxu0 0.0
    %975 = vmatpush2.msra.mxu0 0.0
    %976 = vmatprep.subr.mxu0 0.0
    %977 = vmatpush2.msra.mxu0 0.0
    %978 = vmatprep.subr.mxu0 0.0
    %979 = vmatpush2.msra.mxu0 0.0
    %980 = vmatprep.subr.mxu0 0.0
    %981 = vmatpush2.msra.mxu0 0.0
    %982 = vmatprep.subr.mxu0 0.0
    %983 = vmatpush2.msra.mxu0 0.0
    %984 = vmatprep.subr.mxu0 0.0
    %985 = vmatpush2.msra.mxu0 0.0
    %986 = vmatprep.subr.mxu0 0.0
    %987 = vmatpush2.msra.mxu0 0.0
    %988 = vmatprep.subr.mxu0 0.0
    %989 = vmatpush2.msra.mxu0 0.0
    %990 = vmatprep.subr.mxu0 0.0
    %991 = vmatpush2.msra.mxu0 0.0
    %992 = vmatprep.subr.mxu0 0.0
    %993 = vmatpush2.msra.mxu0 0.0
    %994 = vmatprep.subr.mxu0 0.0
    %995 = vmatpush2.msra.mxu0 0.0
    %996 = vmatprep.mubr.f32.mxu0 0.0
    %997 = vmatmul.mubr.f32.gmra.mxu0 %v753
    %v998 = vpop.f32.mrf.mxu0
    %v999 = vadd.f32 0.0, %v998
    %v1000 = vpop.f32.mrf.mxu0
    %1001 = vmatprep.mubr.f32.mxu0 0.0
    %1002 = vmatmul.mubr.f32.gmra.mxu0 %v756
    %v1003 = vpop.f32.mrf.mxu0
    %v1004 = vadd.f32 0.0, %v1003
    %v1005 = vpop.f32.mrf.mxu0
    %1006 = vdwg.mxu0
    %1007 = vmatprep.subr.mxu0 0.0
    %1008 = vmatpush1.msra.mxu0 0.0
    %1009 = vmatprep.subr.mxu0 0.0
    %1010 = vmatpush1.msra.mxu0 0.0
    %1011 = vmatprep.subr.mxu0 0.0
    %1012 = vmatpush1.msra.mxu0 0.0
    %1013 = vmatprep.subr.mxu0 0.0
    %1014 = vmatpush1.msra.mxu0 0.0
    %1015 = vmatprep.subr.mxu0 0.0
    %1016 = vmatpush1.msra.mxu0 0.0
    %1017 = vmatprep.subr.mxu0 0.0
    %1018 = vmatpush1.msra.mxu0 0.0
    %1019 = vmatprep.subr.mxu0 0.0
    %1020 = vmatpush1.msra.mxu0 0.0
    %1021 = vmatprep.subr.mxu0 0.0
    %1022 = vmatpush1.msra.mxu0 0.0
    %1023 = vmatprep.subr.mxu0 0.0
    %1024 = vmatpush1.msra.mxu0 0.0
    %1025 = vmatprep.subr.mxu0 0.0
    %1026 = vmatpush1.msra.mxu0 0.0
    %1027 = vmatprep.subr.mxu0 0.0
    %1028 = vmatpush1.msra.mxu0 0.0
    %1029 = vmatprep.subr.mxu0 0.0
    %1030 = vmatpush1.msra.mxu0 0.0
    %1031 = vmatprep.subr.mxu0 0.0
    %1032 = vmatpush1.msra.mxu0 %v735
    %1033 = vmatprep.subr.mxu0 0.0
    %1034 = vmatpush1.msra.mxu0 %v734
    %1035 = vmatprep.subr.mxu0 0.0
    %1036 = vmatpush1.msra.mxu0 %v733
    %1037 = vmatprep.subr.mxu0 0.0
    %1038 = vmatpush1.msra.mxu0 %v732
    %1039 = vmatprep.subr.mxu0 0.0
    %1040 = vmatpush2.msra.mxu0 0.0
    %1041 = vmatprep.subr.mxu0 0.0
    %1042 = vmatpush2.msra.mxu0 0.0
    %1043 = vmatprep.subr.mxu0 0.0
    %1044 = vmatpush2.msra.mxu0 0.0
    %1045 = vmatprep.subr.mxu0 0.0
    %1046 = vmatpush2.msra.mxu0 0.0
    %1047 = vmatprep.subr.mxu0 0.0
    %1048 = vmatpush2.msra.mxu0 0.0
    %1049 = vmatprep.subr.mxu0 0.0
    %1050 = vmatpush2.msra.mxu0 0.0
    %1051 = vmatprep.subr.mxu0 0.0
    %1052 = vmatpush2.msra.mxu0 0.0
    %1053 = vmatprep.subr.mxu0 0.0
    %1054 = vmatpush2.msra.mxu0 0.0
    %1055 = vmatprep.subr.mxu0 0.0
    %1056 = vmatpush2.msra.mxu0 0.0
    %1057 = vmatprep.subr.mxu0 0.0
    %1058 = vmatpush2.msra.mxu0 0.0
    %1059 = vmatprep.subr.mxu0 0.0
    %1060 = vmatpush2.msra.mxu0 0.0
    %1061 = vmatprep.subr.mxu0 0.0
    %1062 = vmatpush2.msra.mxu0 0.0
    %1063 = vmatprep.subr.mxu0 0.0
    %1064 = vmatpush2.msra.mxu0 0.0
    %1065 = vmatprep.subr.mxu0 0.0
    %1066 = vmatpush2.msra.mxu0 0.0
    %1067 = vmatprep.subr.mxu0 0.0
    %1068 = vmatpush2.msra.mxu0 0.0
    %1069 = vmatprep.subr.mxu0 0.0
    %1070 = vmatpush2.msra.mxu0 0.0
    %1071 = vmatprep.mubr.f32.mxu0 0.0
    %1072 = vmatmul.mubr.f32.gmra.mxu0 %v834
    %v1073 = vpop.f32.mrf.mxu0
    %v1074 = vadd.f32 %v999, %v1073
    %v1075 = vpop.f32.mrf.mxu0
    %1076 = vmatprep.mubr.f32.mxu0 0.0
    %1077 = vmatmul.mubr.f32.gmra.mxu0 %v837
    %v1078 = vpop.f32.mrf.mxu0
    %v1079 = vadd.f32 %v1004, %v1078
    %v1080 = vpop.f32.mrf.mxu0
    %1081 = vdwg.mxu0
    %v1082 = vlaneseq
    %v1083 = vshrl.u32 %v1082, 7
    %v1084 = vsub.s32 1, %v1083
    %v1085 = vrot.slane %v726, %v1084
    %v1086 = vadd.f32 %v1074, %v1085
    %v1087 = vadd.f32 %v1079, %v1085
    %v1088 = vxor.u32 %v1086, 2147483648
    %v1089 = vxor.u32 %v1087, 2147483648
    %v1090 = vmul.f32 %v1088, 1.442695
    %v1091 = vpow.pop %v1090
    %v1092 = vmul.f32 %v1089, 1.442695
    %v1093 = vpow.pop %v1092
    %v1094 = vadd.f32 %v1091, 1.0
    %v1095 = vadd.f32 %v1093, 1.0
    %v1096 = vrcp.pop %v1094
    %v1097 = vmul.f32 1.0, %v1096
    %v1098 = vrcp.pop %v1095
    %v1099 = vmul.f32 1.0, %v1098
    %v1100 = vlaneseq
    %v1101 = vshrl.u32 %v1100, 7
    %v1102 = vsub.s32 2, %v1101
    %v1103 = vrot.slane %v726, %v1102
    %1104 = vmatprep.subr.mxu0 0.0
    %1105 = vmatpush1.msra.mxu0 0.0
    %1106 = vmatprep.subr.mxu0 0.0
    %1107 = vmatpush1.msra.mxu0 0.0
    %1108 = vmatprep.subr.mxu0 0.0
    %1109 = vmatpush1.msra.mxu0 0.0
    %1110 = vmatprep.subr.mxu0 0.0
    %1111 = vmatpush1.msra.mxu0 0.0
    %1112 = vmatprep.subr.mxu0 0.0
    %1113 = vmatpush1.msra.mxu0 0.0
    %1114 = vmatprep.subr.mxu0 0.0
    %1115 = vmatpush1.msra.mxu0 0.0
    %1116 = vmatprep.subr.mxu0 0.0
    %1117 = vmatpush1.msra.mxu0 0.0
    %1118 = vmatprep.subr.mxu0 0.0
    %1119 = vmatpush1.msra.mxu0 0.0
    %1120 = vmatprep.subr.mxu0 0.0
    %1121 = vmatpush1.msra.mxu0 0.0
    %1122 = vmatprep.subr.mxu0 0.0
    %1123 = vmatpush1.msra.mxu0 0.0
    %1124 = vmatprep.subr.mxu0 0.0
    %1125 = vmatpush1.msra.mxu0 0.0
    %1126 = vmatprep.subr.mxu0 0.0
    %1127 = vmatpush1.msra.mxu0 0.0
    %1128 = vmatprep.subr.mxu0 0.0
    %1129 = vmatpush1.msra.mxu0 %v739
    %1130 = vmatprep.subr.mxu0 0.0
    %1131 = vmatpush1.msra.mxu0 %v738
    %1132 = vmatprep.subr.mxu0 0.0
    %1133 = vmatpush1.msra.mxu0 %v737
    %1134 = vmatprep.subr.mxu0 0.0
    %1135 = vmatpush1.msra.mxu0 %v736
    %1136 = vmatprep.subr.mxu0 0.0
    %1137 = vmatpush2.msra.mxu0 0.0
    %1138 = vmatprep.subr.mxu0 0.0
    %1139 = vmatpush2.msra.mxu0 0.0
    %1140 = vmatprep.subr.mxu0 0.0
    %1141 = vmatpush2.msra.mxu0 0.0
    %1142 = vmatprep.subr.mxu0 0.0
    %1143 = vmatpush2.msra.mxu0 0.0
    %1144 = vmatprep.subr.mxu0 0.0
    %1145 = vmatpush2.msra.mxu0 0.0
    %1146 = vmatprep.subr.mxu0 0.0
    %1147 = vmatpush2.msra.mxu0 0.0
    %1148 = vmatprep.subr.mxu0 0.0
    %1149 = vmatpush2.msra.mxu0 0.0
    %1150 = vmatprep.subr.mxu0 0.0
    %1151 = vmatpush2.msra.mxu0 0.0
    %1152 = vmatprep.subr.mxu0 0.0
    %1153 = vmatpush2.msra.mxu0 0.0
    %1154 = vmatprep.subr.mxu0 0.0
    %1155 = vmatpush2.msra.mxu0 0.0
    %1156 = vmatprep.subr.mxu0 0.0
    %1157 = vmatpush2.msra.mxu0 0.0
    %1158 = vmatprep.subr.mxu0 0.0
    %1159 = vmatpush2.msra.mxu0 0.0
    %1160 = vmatprep.subr.mxu0 0.0
    %1161 = vmatpush2.msra.mxu0 0.0
    %1162 = vmatprep.subr.mxu0 0.0
    %1163 = vmatpush2.msra.mxu0 0.0
    %1164 = vmatprep.subr.mxu0 0.0
    %1165 = vmatpush2.msra.mxu0 0.0
    %1166 = vmatprep.subr.mxu0 0.0
    %1167 = vmatpush2.msra.mxu0 0.0
    %1168 = vmatprep.mubr.f32.mxu0 0.0
    %1169 = vmatmul.mubr.f32.gmra.mxu0 %v834
    %v1170 = vpop.f32.mrf.mxu0
    %v1171 = vadd.f32 %v1103, %v1170
    %v1172 = vpop.f32.mrf.mxu0
    %1173 = vmatprep.mubr.f32.mxu0 0.0
    %1174 = vmatmul.mubr.f32.gmra.mxu0 %v837
    %v1175 = vpop.f32.mrf.mxu0
    %v1176 = vadd.f32 %v1103, %v1175
    %v1177 = vpop.f32.mrf.mxu0
    %1178 = vdwg.mxu0
    %v1179 = vlaneseq
    %v1180 = vshrl.u32 %v1179, 7
    %v1181 = vsub.s32 3, %v1180
    %v1182 = vrot.slane %v726, %v1181
    %1183 = vmatprep.subr.mxu0 0.0
    %1184 = vmatpush1.msra.mxu0 0.0
    %1185 = vmatprep.subr.mxu0 0.0
    %1186 = vmatpush1.msra.mxu0 0.0
    %1187 = vmatprep.subr.mxu0 0.0
    %1188 = vmatpush1.msra.mxu0 0.0
    %1189 = vmatprep.subr.mxu0 0.0
    %1190 = vmatpush1.msra.mxu0 0.0
    %1191 = vmatprep.subr.mxu0 0.0
    %1192 = vmatpush1.msra.mxu0 0.0
    %1193 = vmatprep.subr.mxu0 0.0
    %1194 = vmatpush1.msra.mxu0 0.0
    %1195 = vmatprep.subr.mxu0 0.0
    %1196 = vmatpush1.msra.mxu0 0.0
    %1197 = vmatprep.subr.mxu0 0.0
    %1198 = vmatpush1.msra.mxu0 0.0
    %1199 = vmatprep.subr.mxu0 0.0
    %1200 = vmatpush1.msra.mxu0 0.0
    %1201 = vmatprep.subr.mxu0 0.0
    %1202 = vmatpush1.msra.mxu0 0.0
    %1203 = vmatprep.subr.mxu0 0.0
    %1204 = vmatpush1.msra.mxu0 0.0
    %1205 = vmatprep.subr.mxu0 0.0
    %1206 = vmatpush1.msra.mxu0 0.0
    %1207 = vmatprep.subr.mxu0 0.0
    %1208 = vmatpush1.msra.mxu0 %v751
    %1209 = vmatprep.subr.mxu0 0.0
    %1210 = vmatpush1.msra.mxu0 %v750
    %1211 = vmatprep.subr.mxu0 0.0
    %1212 = vmatpush1.msra.mxu0 %v749
    %1213 = vmatprep.subr.mxu0 0.0
    %1214 = vmatpush1.msra.mxu0 %v748
    %1215 = vmatprep.subr.mxu0 0.0
    %1216 = vmatpush2.msra.mxu0 0.0
    %1217 = vmatprep.subr.mxu0 0.0
    %1218 = vmatpush2.msra.mxu0 0.0
    %1219 = vmatprep.subr.mxu0 0.0
    %1220 = vmatpush2.msra.mxu0 0.0
    %1221 = vmatprep.subr.mxu0 0.0
    %1222 = vmatpush2.msra.mxu0 0.0
    %1223 = vmatprep.subr.mxu0 0.0
    %1224 = vmatpush2.msra.mxu0 0.0
    %1225 = vmatprep.subr.mxu0 0.0
    %1226 = vmatpush2.msra.mxu0 0.0
    %1227 = vmatprep.subr.mxu0 0.0
    %1228 = vmatpush2.msra.mxu0 0.0
    %1229 = vmatprep.subr.mxu0 0.0
    %1230 = vmatpush2.msra.mxu0 0.0
    %1231 = vmatprep.subr.mxu0 0.0
    %1232 = vmatpush2.msra.mxu0 0.0
    %1233 = vmatprep.subr.mxu0 0.0
    %1234 = vmatpush2.msra.mxu0 0.0
    %1235 = vmatprep.subr.mxu0 0.0
    %1236 = vmatpush2.msra.mxu0 0.0
    %1237 = vmatprep.subr.mxu0 0.0
    %1238 = vmatpush2.msra.mxu0 0.0
    %1239 = vmatprep.subr.mxu0 0.0
    %1240 = vmatpush2.msra.mxu0 0.0
    %1241 = vmatprep.subr.mxu0 0.0
    %1242 = vmatpush2.msra.mxu0 0.0
    %1243 = vmatprep.subr.mxu0 0.0
    %1244 = vmatpush2.msra.mxu0 0.0
    %1245 = vmatprep.subr.mxu0 0.0
    %1246 = vmatpush2.msra.mxu0 0.0
    %1247 = vmatprep.mubr.f32.mxu0 0.0
    %1248 = vmatmul.mubr.f32.gmra.mxu0 %v753
    %v1249 = vpop.f32.mrf.mxu0
    %v1250 = vadd.f32 %v1182, %v1249
    %v1251 = vpop.f32.mrf.mxu0
    %1252 = vmatprep.mubr.f32.mxu0 0.0
    %1253 = vmatmul.mubr.f32.gmra.mxu0 %v756
    %v1254 = vpop.f32.mrf.mxu0
    %v1255 = vadd.f32 %v1182, %v1254
    %v1256 = vpop.f32.mrf.mxu0
    %1257 = vdwg.mxu0
    %v1258 = vmul.f32 %v929, %v1250
    %v1259 = vmul.f32 %v931, %v1255
    %v1260 = vadd.f32 %v1171, %v1258
    %v1261 = vadd.f32 %v1176, %v1259
    %v1262 = vtanh.pop %v1260
    %v1263 = vtanh.pop %v1261
    %v1264 = vsub.f32 1.0, %v1097
    %v1265 = vsub.f32 1.0, %v1099
    %v1266 = vmul.f32 %v1264, %v1262
    %v1267 = vmul.f32 %v1265, %v1263
    %v1268 = vmul.f32 %v1097, %v648
    %v1269 = vmul.f32 %v1099, %v649
    %v1270 = vadd.f32 %v1266, %v1268
    %v1271 = vadd.f32 %v1267, %v1269
    %1272 = vmatprep.subr.mxu0 0.0
    %1273 = vmatpush1.msra.mxu0 0.0
    %1274 = vmatprep.subr.mxu0 0.0
    %1275 = vmatpush1.msra.mxu0 0.0
    %1276 = vmatprep.subr.mxu0 0.0
    %1277 = vmatpush1.msra.mxu0 0.0
    %1278 = vmatprep.subr.mxu0 0.0
    %1279 = vmatpush1.msra.mxu0 0.0
    %1280 = vmatprep.subr.mxu0 0.0
    %1281 = vmatpush1.msra.mxu0 0.0
    %1282 = vmatprep.subr.mxu0 0.0
    %1283 = vmatpush1.msra.mxu0 0.0
    %1284 = vmatprep.subr.mxu0 0.0
    %1285 = vmatpush1.msra.mxu0 0.0
    %1286 = vmatprep.subr.mxu0 0.0
    %1287 = vmatpush1.msra.mxu0 0.0
    %1288 = vmatprep.subr.mxu0 0.0
    %1289 = vmatpush1.msra.mxu0 0.0
    %1290 = vmatprep.subr.mxu0 0.0
    %1291 = vmatpush1.msra.mxu0 0.0
    %1292 = vmatprep.subr.mxu0 0.0
    %1293 = vmatpush1.msra.mxu0 0.0
    %1294 = vmatprep.subr.mxu0 0.0
    %1295 = vmatpush1.msra.mxu0 0.0
    %1296 = vmatprep.subr.mxu0 0.0
    %1297 = vmatpush1.msra.mxu0 0.0
    %1298 = vmatprep.subr.mxu0 0.0
    %1299 = vmatpush1.msra.mxu0 0.0
    %1300 = vmatprep.subr.mxu0 0.0
    %1301 = vmatpush1.msra.mxu0 %v1271
    %1302 = vmatprep.subr.mxu0 0.0
    %1303 = vmatpush1.msra.mxu0 %v1270
    %1304 = vmatprep.subr.mxu0 0.0
    %1305 = vmatpush2.msra.mxu0 0.0
    %1306 = vmatprep.subr.mxu0 0.0
    %1307 = vmatpush2.msra.mxu0 0.0
    %1308 = vmatprep.subr.mxu0 0.0
    %1309 = vmatpush2.msra.mxu0 0.0
    %1310 = vmatprep.subr.mxu0 0.0
    %1311 = vmatpush2.msra.mxu0 0.0
    %1312 = vmatprep.subr.mxu0 0.0
    %1313 = vmatpush2.msra.mxu0 0.0
    %1314 = vmatprep.subr.mxu0 0.0
    %1315 = vmatpush2.msra.mxu0 0.0
    %1316 = vmatprep.subr.mxu0 0.0
    %1317 = vmatpush2.msra.mxu0 0.0
    %1318 = vmatprep.subr.mxu0 0.0
    %1319 = vmatpush2.msra.mxu0 0.0
    %1320 = vmatprep.subr.mxu0 0.0
    %1321 = vmatpush2.msra.mxu0 0.0
    %1322 = vmatprep.subr.mxu0 0.0
    %1323 = vmatpush2.msra.mxu0 0.0
    %1324 = vmatprep.subr.mxu0 0.0
    %1325 = vmatpush2.msra.mxu0 0.0
    %1326 = vmatprep.subr.mxu0 0.0
    %1327 = vmatpush2.msra.mxu0 0.0
    %1328 = vmatprep.subr.mxu0 0.0
    %1329 = vmatpush2.msra.mxu0 0.0
    %1330 = vmatprep.subr.mxu0 0.0
    %1331 = vmatpush2.msra.mxu0 0.0
    %1332 = vmatprep.subr.mxu0 0.0
    %1333 = vmatpush2.msra.mxu0 0.0
    %1334 = vmatprep.subr.mxu0 0.0
    %1335 = vmatpush2.msra.mxu0 0.0
    %1336 = vmatprep.mubr.f32.mxu0 0.0
    %1337 = vmatmul.mubr.f32.gmra.mxu0 %v24
    %v1338 = vpop.f32.mrf.mxu0
    %v1339 = vadd.f32 0.0, %v1338
    %v1340 = vpop.f32.mrf.mxu0
    %1341 = vmatprep.mubr.f32.mxu0 0.0
    %1342 = vmatmul.mubr.f32.gmra.mxu0 %v27
    %v1343 = vpop.f32.mrf.mxu0
    %v1344 = vadd.f32 0.0, %v1343
    %v1345 = vpop.f32.mrf.mxu0
    %1346 = vdwg.mxu0
    %s1347 = scalar_lea.vmem %s3, 8
    %v1348 = vld [vmem:[%s1347] sm:$0xf]
    %s1349 = scalar_lea.vmem %s2, 384
    %v1350 = vld [vmem:[%s1349] sm:$0xff]
    %v1351 = vld [vmem:[%s1349 + $0x8] sm:$0xff]
    %v1352 = vld [vmem:[%s1349 + $0x10] sm:$0xff]
    %v1353 = vld [vmem:[%s1349 + $0x18] sm:$0xff]
    %v1354 = vld [vmem:[%s1349 + $0x20] sm:$0xff]
    %v1355 = vld [vmem:[%s1349 + $0x28] sm:$0xff]
    %v1356 = vld [vmem:[%s1349 + $0x30] sm:$0xff]
    %v1357 = vld [vmem:[%s1349 + $0x38] sm:$0xff]
    %v1358 = vld [vmem:[%s1349 + $0x40] sm:$0xff]
    %v1359 = vld [vmem:[%s1349 + $0x48] sm:$0xff]
    %v1360 = vld [vmem:[%s1349 + $0x50] sm:$0xff]
    %v1361 = vld [vmem:[%s1349 + $0x58] sm:$0xff]
    %v1362 = vld [vmem:[%s1349 + $0x60] sm:$0xff]
    %v1363 = vld [vmem:[%s1349 + $0x68] sm:$0xff]
    %v1364 = vld [vmem:[%s1349 + $0x70] sm:$0xff]
    %v1365 = vld [vmem:[%s1349 + $0x78] sm:$0xff]
    %v1366 = vld [vmem:[%s1349 + $0x80] sm:$0xff]
    %v1367 = vld [vmem:[%s1349 + $0x88] sm:$0xff]
    %v1368 = vld [vmem:[%s1349 + $0x90] sm:$0xff]
    %v1369 = vld [vmem:[%s1349 + $0x98] sm:$0xff]
    %v1370 = vld [vmem:[%s1349 + $0xa0] sm:$0xff]
    %v1371 = vld [vmem:[%s1349 + $0xa8] sm:$0xff]
    %v1372 = vld [vmem:[%s1349 + $0xb0] sm:$0xff]
    %v1373 = vld [vmem:[%s1349 + $0xb8] sm:$0xff]
    %v1375 = vsel %vm129, %v1270, 0
    %v1378 = vsel %vm129, %v1271, 0
    %1380 = vmatprep.subr.mxu0 0.0
    %1381 = vmatpush1.msra.mxu0 0.0
    %1382 = vmatprep.subr.mxu0 0.0
    %1383 = vmatpush1.msra.mxu0 0.0
    %1384 = vmatprep.subr.mxu0 0.0
    %1385 = vmatpush1.msra.mxu0 0.0
    %1386 = vmatprep.subr.mxu0 0.0
    %1387 = vmatpush1.msra.mxu0 0.0
    %1388 = vmatprep.subr.mxu0 0.0
    %1389 = vmatpush1.msra.mxu0 0.0
    %1390 = vmatprep.subr.mxu0 0.0
    %1391 = vmatpush1.msra.mxu0 0.0
    %1392 = vmatprep.subr.mxu0 0.0
    %1393 = vmatpush1.msra.mxu0 0.0
    %1394 = vmatprep.subr.mxu0 0.0
    %1395 = vmatpush1.msra.mxu0 0.0
    %1396 = vmatprep.subr.mxu0 0.0
    %1397 = vmatpush1.msra.mxu0 0.0
    %1398 = vmatprep.subr.mxu0 0.0
    %1399 = vmatpush1.msra.mxu0 0.0
    %1400 = vmatprep.subr.mxu0 0.0
    %1401 = vmatpush1.msra.mxu0 0.0
    %1402 = vmatprep.subr.mxu0 0.0
    %1403 = vmatpush1.msra.mxu0 0.0
    %1404 = vmatprep.subr.mxu0 0.0
    %1405 = vmatpush1.msra.mxu0 %v1365
    %1406 = vmatprep.subr.mxu0 0.0
    %1407 = vmatpush1.msra.mxu0 %v1364
    %1408 = vmatprep.subr.mxu0 0.0
    %1409 = vmatpush1.msra.mxu0 %v1363
    %1410 = vmatprep.subr.mxu0 0.0
    %1411 = vmatpush1.msra.mxu0 %v1362
    %1412 = vmatprep.subr.mxu0 0.0
    %1413 = vmatpush2.msra.mxu0 0.0
    %1414 = vmatprep.subr.mxu0 0.0
    %1415 = vmatpush2.msra.mxu0 0.0
    %1416 = vmatprep.subr.mxu0 0.0
    %1417 = vmatpush2.msra.mxu0 0.0
    %1418 = vmatprep.subr.mxu0 0.0
    %1419 = vmatpush2.msra.mxu0 0.0
    %1420 = vmatprep.subr.mxu0 0.0
    %1421 = vmatpush2.msra.mxu0 0.0
    %1422 = vmatprep.subr.mxu0 0.0
    %1423 = vmatpush2.msra.mxu0 0.0
    %1424 = vmatprep.subr.mxu0 0.0
    %1425 = vmatpush2.msra.mxu0 0.0
    %1426 = vmatprep.subr.mxu0 0.0
    %1427 = vmatpush2.msra.mxu0 0.0
    %1428 = vmatprep.subr.mxu0 0.0
    %1429 = vmatpush2.msra.mxu0 0.0
    %1430 = vmatprep.subr.mxu0 0.0
    %1431 = vmatpush2.msra.mxu0 0.0
    %1432 = vmatprep.subr.mxu0 0.0
    %1433 = vmatpush2.msra.mxu0 0.0
    %1434 = vmatprep.subr.mxu0 0.0
    %1435 = vmatpush2.msra.mxu0 0.0
    %1436 = vmatprep.subr.mxu0 0.0
    %1437 = vmatpush2.msra.mxu0 0.0
    %1438 = vmatprep.subr.mxu0 0.0
    %1439 = vmatpush2.msra.mxu0 0.0
    %1440 = vmatprep.subr.mxu0 0.0
    %1441 = vmatpush2.msra.mxu0 0.0
    %1442 = vmatprep.subr.mxu0 0.0
    %1443 = vmatpush2.msra.mxu0 0.0
    %1444 = vmatprep.mubr.f32.mxu0 0.0
    %1445 = vmatmul.mubr.f32.gmra.mxu0 %v1375
    %v1446 = vpop.f32.mrf.mxu0
    %v1447 = vadd.f32 0.0, %v1446
    %v1448 = vpop.f32.mrf.mxu0
    %1449 = vmatprep.mubr.f32.mxu0 0.0
    %1450 = vmatmul.mubr.f32.gmra.mxu0 %v1378
    %v1451 = vpop.f32.mrf.mxu0
    %v1452 = vadd.f32 0.0, %v1451
    %v1453 = vpop.f32.mrf.mxu0
    %1454 = vdwg.mxu0
    %v1456 = vsel %vm129, %v1339, 0
    %v1459 = vsel %vm129, %v1344, 0
    %1461 = vmatprep.subr.mxu0 0.0
    %1462 = vmatpush1.msra.mxu0 0.0
    %1463 = vmatprep.subr.mxu0 0.0
    %1464 = vmatpush1.msra.mxu0 0.0
    %1465 = vmatprep.subr.mxu0 0.0
    %1466 = vmatpush1.msra.mxu0 0.0
    %1467 = vmatprep.subr.mxu0 0.0
    %1468 = vmatpush1.msra.mxu0 0.0
    %1469 = vmatprep.subr.mxu0 0.0
    %1470 = vmatpush1.msra.mxu0 0.0
    %1471 = vmatprep.subr.mxu0 0.0
    %1472 = vmatpush1.msra.mxu0 0.0
    %1473 = vmatprep.subr.mxu0 0.0
    %1474 = vmatpush1.msra.mxu0 0.0
    %1475 = vmatprep.subr.mxu0 0.0
    %1476 = vmatpush1.msra.mxu0 0.0
    %1477 = vmatprep.subr.mxu0 0.0
    %1478 = vmatpush1.msra.mxu0 0.0
    %1479 = vmatprep.subr.mxu0 0.0
    %1480 = vmatpush1.msra.mxu0 0.0
    %1481 = vmatprep.subr.mxu0 0.0
    %1482 = vmatpush1.msra.mxu0 0.0
    %1483 = vmatprep.subr.mxu0 0.0
    %1484 = vmatpush1.msra.mxu0 0.0
    %1485 = vmatprep.subr.mxu0 0.0
    %1486 = vmatpush1.msra.mxu0 %v1353
    %1487 = vmatprep.subr.mxu0 0.0
    %1488 = vmatpush1.msra.mxu0 %v1352
    %1489 = vmatprep.subr.mxu0 0.0
    %1490 = vmatpush1.msra.mxu0 %v1351
    %1491 = vmatprep.subr.mxu0 0.0
    %1492 = vmatpush1.msra.mxu0 %v1350
    %1493 = vmatprep.subr.mxu0 0.0
    %1494 = vmatpush2.msra.mxu0 0.0
    %1495 = vmatprep.subr.mxu0 0.0
    %1496 = vmatpush2.msra.mxu0 0.0
    %1497 = vmatprep.subr.mxu0 0.0
    %1498 = vmatpush2.msra.mxu0 0.0
    %1499 = vmatprep.subr.mxu0 0.0
    %1500 = vmatpush2.msra.mxu0 0.0
    %1501 = vmatprep.subr.mxu0 0.0
    %1502 = vmatpush2.msra.mxu0 0.0
    %1503 = vmatprep.subr.mxu0 0.0
    %1504 = vmatpush2.msra.mxu0 0.0
    %1505 = vmatprep.subr.mxu0 0.0
    %1506 = vmatpush2.msra.mxu0 0.0
    %1507 = vmatprep.subr.mxu0 0.0
    %1508 = vmatpush2.msra.mxu0 0.0
    %1509 = vmatprep.subr.mxu0 0.0
    %1510 = vmatpush2.msra.mxu0 0.0
    %1511 = vmatprep.subr.mxu0 0.0
    %1512 = vmatpush2.msra.mxu0 0.0
    %1513 = vmatprep.subr.mxu0 0.0
    %1514 = vmatpush2.msra.mxu0 0.0
    %1515 = vmatprep.subr.mxu0 0.0
    %1516 = vmatpush2.msra.mxu0 0.0
    %1517 = vmatprep.subr.mxu0 0.0
    %1518 = vmatpush2.msra.mxu0 0.0
    %1519 = vmatprep.subr.mxu0 0.0
    %1520 = vmatpush2.msra.mxu0 0.0
    %1521 = vmatprep.subr.mxu0 0.0
    %1522 = vmatpush2.msra.mxu0 0.0
    %1523 = vmatprep.subr.mxu0 0.0
    %1524 = vmatpush2.msra.mxu0 0.0
    %1525 = vmatprep.mubr.f32.mxu0 0.0
    %1526 = vmatmul.mubr.f32.gmra.mxu0 %v1456
    %v1527 = vpop.f32.mrf.mxu0
    %v1528 = vadd.f32 %v1447, %v1527
    %v1529 = vpop.f32.mrf.mxu0
    %1530 = vmatprep.mubr.f32.mxu0 0.0
    %1531 = vmatmul.mubr.f32.gmra.mxu0 %v1459
    %v1532 = vpop.f32.mrf.mxu0
    %v1533 = vadd.f32 %v1452, %v1532
    %v1534 = vpop.f32.mrf.mxu0
    %1535 = vdwg.mxu0
    %v1536 = vlaneseq
    %v1537 = vshrl.u32 %v1536, 7
    %v1538 = vsub.s32 0, %v1537
    %v1539 = vrot.slane %v1348, %v1538
    %v1540 = vadd.f32 %v1528, %v1539
    %v1541 = vadd.f32 %v1533, %v1539
    %v1542 = vxor.u32 %v1540, 2147483648
    %v1543 = vxor.u32 %v1541, 2147483648
    %v1544 = vmul.f32 %v1542, 1.442695
    %v1545 = vpow.pop %v1544
    %v1546 = vmul.f32 %v1543, 1.442695
    %v1547 = vpow.pop %v1546
    %v1548 = vadd.f32 %v1545, 1.0
    %v1549 = vadd.f32 %v1547, 1.0
    %v1550 = vrcp.pop %v1548
    %v1551 = vmul.f32 1.0, %v1550
    %v1552 = vrcp.pop %v1549
    %v1553 = vmul.f32 1.0, %v1552
    %1554 = vmatprep.subr.mxu0 0.0
    %1555 = vmatpush1.msra.mxu0 0.0
    %1556 = vmatprep.subr.mxu0 0.0
    %1557 = vmatpush1.msra.mxu0 0.0
    %1558 = vmatprep.subr.mxu0 0.0
    %1559 = vmatpush1.msra.mxu0 0.0
    %1560 = vmatprep.subr.mxu0 0.0
    %1561 = vmatpush1.msra.mxu0 0.0
    %1562 = vmatprep.subr.mxu0 0.0
    %1563 = vmatpush1.msra.mxu0 0.0
    %1564 = vmatprep.subr.mxu0 0.0
    %1565 = vmatpush1.msra.mxu0 0.0
    %1566 = vmatprep.subr.mxu0 0.0
    %1567 = vmatpush1.msra.mxu0 0.0
    %1568 = vmatprep.subr.mxu0 0.0
    %1569 = vmatpush1.msra.mxu0 0.0
    %1570 = vmatprep.subr.mxu0 0.0
    %1571 = vmatpush1.msra.mxu0 0.0
    %1572 = vmatprep.subr.mxu0 0.0
    %1573 = vmatpush1.msra.mxu0 0.0
    %1574 = vmatprep.subr.mxu0 0.0
    %1575 = vmatpush1.msra.mxu0 0.0
    %1576 = vmatprep.subr.mxu0 0.0
    %1577 = vmatpush1.msra.mxu0 0.0
    %1578 = vmatprep.subr.mxu0 0.0
    %1579 = vmatpush1.msra.mxu0 %v1369
    %1580 = vmatprep.subr.mxu0 0.0
    %1581 = vmatpush1.msra.mxu0 %v1368
    %1582 = vmatprep.subr.mxu0 0.0
    %1583 = vmatpush1.msra.mxu0 %v1367
    %1584 = vmatprep.subr.mxu0 0.0
    %1585 = vmatpush1.msra.mxu0 %v1366
    %1586 = vmatprep.subr.mxu0 0.0
    %1587 = vmatpush2.msra.mxu0 0.0
    %1588 = vmatprep.subr.mxu0 0.0
    %1589 = vmatpush2.msra.mxu0 0.0
    %1590 = vmatprep.subr.mxu0 0.0
    %1591 = vmatpush2.msra.mxu0 0.0
    %1592 = vmatprep.subr.mxu0 0.0
    %1593 = vmatpush2.msra.mxu0 0.0
    %1594 = vmatprep.subr.mxu0 0.0
    %1595 = vmatpush2.msra.mxu0 0.0
    %1596 = vmatprep.subr.mxu0 0.0
    %1597 = vmatpush2.msra.mxu0 0.0
    %1598 = vmatprep.subr.mxu0 0.0
    %1599 = vmatpush2.msra.mxu0 0.0
    %1600 = vmatprep.subr.mxu0 0.0
    %1601 = vmatpush2.msra.mxu0 0.0
    %1602 = vmatprep.subr.mxu0 0.0
    %1603 = vmatpush2.msra.mxu0 0.0
    %1604 = vmatprep.subr.mxu0 0.0
    %1605 = vmatpush2.msra.mxu0 0.0
    %1606 = vmatprep.subr.mxu0 0.0
    %1607 = vmatpush2.msra.mxu0 0.0
    %1608 = vmatprep.subr.mxu0 0.0
    %1609 = vmatpush2.msra.mxu0 0.0
    %1610 = vmatprep.subr.mxu0 0.0
    %1611 = vmatpush2.msra.mxu0 0.0
    %1612 = vmatprep.subr.mxu0 0.0
    %1613 = vmatpush2.msra.mxu0 0.0
    %1614 = vmatprep.subr.mxu0 0.0
    %1615 = vmatpush2.msra.mxu0 0.0
    %1616 = vmatprep.subr.mxu0 0.0
    %1617 = vmatpush2.msra.mxu0 0.0
    %1618 = vmatprep.mubr.f32.mxu0 0.0
    %1619 = vmatmul.mubr.f32.gmra.mxu0 %v1375
    %v1620 = vpop.f32.mrf.mxu0
    %v1621 = vadd.f32 0.0, %v1620
    %v1622 = vpop.f32.mrf.mxu0
    %1623 = vmatprep.mubr.f32.mxu0 0.0
    %1624 = vmatmul.mubr.f32.gmra.mxu0 %v1378
    %v1625 = vpop.f32.mrf.mxu0
    %v1626 = vadd.f32 0.0, %v1625
    %v1627 = vpop.f32.mrf.mxu0
    %1628 = vdwg.mxu0
    %1629 = vmatprep.subr.mxu0 0.0
    %1630 = vmatpush1.msra.mxu0 0.0
    %1631 = vmatprep.subr.mxu0 0.0
    %1632 = vmatpush1.msra.mxu0 0.0
    %1633 = vmatprep.subr.mxu0 0.0
    %1634 = vmatpush1.msra.mxu0 0.0
    %1635 = vmatprep.subr.mxu0 0.0
    %1636 = vmatpush1.msra.mxu0 0.0
    %1637 = vmatprep.subr.mxu0 0.0
    %1638 = vmatpush1.msra.mxu0 0.0
    %1639 = vmatprep.subr.mxu0 0.0
    %1640 = vmatpush1.msra.mxu0 0.0
    %1641 = vmatprep.subr.mxu0 0.0
    %1642 = vmatpush1.msra.mxu0 0.0
    %1643 = vmatprep.subr.mxu0 0.0
    %1644 = vmatpush1.msra.mxu0 0.0
    %1645 = vmatprep.subr.mxu0 0.0
    %1646 = vmatpush1.msra.mxu0 0.0
    %1647 = vmatprep.subr.mxu0 0.0
    %1648 = vmatpush1.msra.mxu0 0.0
    %1649 = vmatprep.subr.mxu0 0.0
    %1650 = vmatpush1.msra.mxu0 0.0
    %1651 = vmatprep.subr.mxu0 0.0
    %1652 = vmatpush1.msra.mxu0 0.0
    %1653 = vmatprep.subr.mxu0 0.0
    %1654 = vmatpush1.msra.mxu0 %v1357
    %1655 = vmatprep.subr.mxu0 0.0
    %1656 = vmatpush1.msra.mxu0 %v1356
    %1657 = vmatprep.subr.mxu0 0.0
    %1658 = vmatpush1.msra.mxu0 %v1355
    %1659 = vmatprep.subr.mxu0 0.0
    %1660 = vmatpush1.msra.mxu0 %v1354
    %1661 = vmatprep.subr.mxu0 0.0
    %1662 = vmatpush2.msra.mxu0 0.0
    %1663 = vmatprep.subr.mxu0 0.0
    %1664 = vmatpush2.msra.mxu0 0.0
    %1665 = vmatprep.subr.mxu0 0.0
    %1666 = vmatpush2.msra.mxu0 0.0
    %1667 = vmatprep.subr.mxu0 0.0
    %1668 = vmatpush2.msra.mxu0 0.0
    %1669 = vmatprep.subr.mxu0 0.0
    %1670 = vmatpush2.msra.mxu0 0.0
    %1671 = vmatprep.subr.mxu0 0.0
    %1672 = vmatpush2.msra.mxu0 0.0
    %1673 = vmatprep.subr.mxu0 0.0
    %1674 = vmatpush2.msra.mxu0 0.0
    %1675 = vmatprep.subr.mxu0 0.0
    %1676 = vmatpush2.msra.mxu0 0.0
    %1677 = vmatprep.subr.mxu0 0.0
    %1678 = vmatpush2.msra.mxu0 0.0
    %1679 = vmatprep.subr.mxu0 0.0
    %1680 = vmatpush2.msra.mxu0 0.0
    %1681 = vmatprep.subr.mxu0 0.0
    %1682 = vmatpush2.msra.mxu0 0.0
    %1683 = vmatprep.subr.mxu0 0.0
    %1684 = vmatpush2.msra.mxu0 0.0
    %1685 = vmatprep.subr.mxu0 0.0
    %1686 = vmatpush2.msra.mxu0 0.0
    %1687 = vmatprep.subr.mxu0 0.0
    %1688 = vmatpush2.msra.mxu0 0.0
    %1689 = vmatprep.subr.mxu0 0.0
    %1690 = vmatpush2.msra.mxu0 0.0
    %1691 = vmatprep.subr.mxu0 0.0
    %1692 = vmatpush2.msra.mxu0 0.0
    %1693 = vmatprep.mubr.f32.mxu0 0.0
    %1694 = vmatmul.mubr.f32.gmra.mxu0 %v1456
    %v1695 = vpop.f32.mrf.mxu0
    %v1696 = vadd.f32 %v1621, %v1695
    %v1697 = vpop.f32.mrf.mxu0
    %1698 = vmatprep.mubr.f32.mxu0 0.0
    %1699 = vmatmul.mubr.f32.gmra.mxu0 %v1459
    %v1700 = vpop.f32.mrf.mxu0
    %v1701 = vadd.f32 %v1626, %v1700
    %v1702 = vpop.f32.mrf.mxu0
    %1703 = vdwg.mxu0
    %v1704 = vlaneseq
    %v1705 = vshrl.u32 %v1704, 7
    %v1706 = vsub.s32 1, %v1705
    %v1707 = vrot.slane %v1348, %v1706
    %v1708 = vadd.f32 %v1696, %v1707
    %v1709 = vadd.f32 %v1701, %v1707
    %v1710 = vxor.u32 %v1708, 2147483648
    %v1711 = vxor.u32 %v1709, 2147483648
    %v1712 = vmul.f32 %v1710, 1.442695
    %v1713 = vpow.pop %v1712
    %v1714 = vmul.f32 %v1711, 1.442695
    %v1715 = vpow.pop %v1714
    %v1716 = vadd.f32 %v1713, 1.0
    %v1717 = vadd.f32 %v1715, 1.0
    %v1718 = vrcp.pop %v1716
    %v1719 = vmul.f32 1.0, %v1718
    %v1720 = vrcp.pop %v1717
    %v1721 = vmul.f32 1.0, %v1720
    %v1722 = vlaneseq
    %v1723 = vshrl.u32 %v1722, 7
    %v1724 = vsub.s32 2, %v1723
    %v1725 = vrot.slane %v1348, %v1724
    %1726 = vmatprep.subr.mxu0 0.0
    %1727 = vmatpush1.msra.mxu0 0.0
    %1728 = vmatprep.subr.mxu0 0.0
    %1729 = vmatpush1.msra.mxu0 0.0
    %1730 = vmatprep.subr.mxu0 0.0
    %1731 = vmatpush1.msra.mxu0 0.0
    %1732 = vmatprep.subr.mxu0 0.0
    %1733 = vmatpush1.msra.mxu0 0.0
    %1734 = vmatprep.subr.mxu0 0.0
    %1735 = vmatpush1.msra.mxu0 0.0
    %1736 = vmatprep.subr.mxu0 0.0
    %1737 = vmatpush1.msra.mxu0 0.0
    %1738 = vmatprep.subr.mxu0 0.0
    %1739 = vmatpush1.msra.mxu0 0.0
    %1740 = vmatprep.subr.mxu0 0.0
    %1741 = vmatpush1.msra.mxu0 0.0
    %1742 = vmatprep.subr.mxu0 0.0
    %1743 = vmatpush1.msra.mxu0 0.0
    %1744 = vmatprep.subr.mxu0 0.0
    %1745 = vmatpush1.msra.mxu0 0.0
    %1746 = vmatprep.subr.mxu0 0.0
    %1747 = vmatpush1.msra.mxu0 0.0
    %1748 = vmatprep.subr.mxu0 0.0
    %1749 = vmatpush1.msra.mxu0 0.0
    %1750 = vmatprep.subr.mxu0 0.0
    %1751 = vmatpush1.msra.mxu0 %v1361
    %1752 = vmatprep.subr.mxu0 0.0
    %1753 = vmatpush1.msra.mxu0 %v1360
    %1754 = vmatprep.subr.mxu0 0.0
    %1755 = vmatpush1.msra.mxu0 %v1359
    %1756 = vmatprep.subr.mxu0 0.0
    %1757 = vmatpush1.msra.mxu0 %v1358
    %1758 = vmatprep.subr.mxu0 0.0
    %1759 = vmatpush2.msra.mxu0 0.0
    %1760 = vmatprep.subr.mxu0 0.0
    %1761 = vmatpush2.msra.mxu0 0.0
    %1762 = vmatprep.subr.mxu0 0.0
    %1763 = vmatpush2.msra.mxu0 0.0
    %1764 = vmatprep.subr.mxu0 0.0
    %1765 = vmatpush2.msra.mxu0 0.0
    %1766 = vmatprep.subr.mxu0 0.0
    %1767 = vmatpush2.msra.mxu0 0.0
    %1768 = vmatprep.subr.mxu0 0.0
    %1769 = vmatpush2.msra.mxu0 0.0
    %1770 = vmatprep.subr.mxu0 0.0
    %1771 = vmatpush2.msra.mxu0 0.0
    %1772 = vmatprep.subr.mxu0 0.0
    %1773 = vmatpush2.msra.mxu0 0.0
    %1774 = vmatprep.subr.mxu0 0.0
    %1775 = vmatpush2.msra.mxu0 0.0
    %1776 = vmatprep.subr.mxu0 0.0
    %1777 = vmatpush2.msra.mxu0 0.0
    %1778 = vmatprep.subr.mxu0 0.0
    %1779 = vmatpush2.msra.mxu0 0.0
    %1780 = vmatprep.subr.mxu0 0.0
    %1781 = vmatpush2.msra.mxu0 0.0
    %1782 = vmatprep.subr.mxu0 0.0
    %1783 = vmatpush2.msra.mxu0 0.0
    %1784 = vmatprep.subr.mxu0 0.0
    %1785 = vmatpush2.msra.mxu0 0.0
    %1786 = vmatprep.subr.mxu0 0.0
    %1787 = vmatpush2.msra.mxu0 0.0
    %1788 = vmatprep.subr.mxu0 0.0
    %1789 = vmatpush2.msra.mxu0 0.0
    %1790 = vmatprep.mubr.f32.mxu0 0.0
    %1791 = vmatmul.mubr.f32.gmra.mxu0 %v1456
    %v1792 = vpop.f32.mrf.mxu0
    %v1793 = vadd.f32 %v1725, %v1792
    %v1794 = vpop.f32.mrf.mxu0
    %1795 = vmatprep.mubr.f32.mxu0 0.0
    %1796 = vmatmul.mubr.f32.gmra.mxu0 %v1459
    %v1797 = vpop.f32.mrf.mxu0
    %v1798 = vadd.f32 %v1725, %v1797
    %v1799 = vpop.f32.mrf.mxu0
    %1800 = vdwg.mxu0
    %v1801 = vlaneseq
    %v1802 = vshrl.u32 %v1801, 7
    %v1803 = vsub.s32 3, %v1802
    %v1804 = vrot.slane %v1348, %v1803
    %1805 = vmatprep.subr.mxu0 0.0
    %1806 = vmatpush1.msra.mxu0 0.0
    %1807 = vmatprep.subr.mxu0 0.0
    %1808 = vmatpush1.msra.mxu0 0.0
    %1809 = vmatprep.subr.mxu0 0.0
    %1810 = vmatpush1.msra.mxu0 0.0
    %1811 = vmatprep.subr.mxu0 0.0
    %1812 = vmatpush1.msra.mxu0 0.0
    %1813 = vmatprep.subr.mxu0 0.0
    %1814 = vmatpush1.msra.mxu0 0.0
    %1815 = vmatprep.subr.mxu0 0.0
    %1816 = vmatpush1.msra.mxu0 0.0
    %1817 = vmatprep.subr.mxu0 0.0
    %1818 = vmatpush1.msra.mxu0 0.0
    %1819 = vmatprep.subr.mxu0 0.0
    %1820 = vmatpush1.msra.mxu0 0.0
    %1821 = vmatprep.subr.mxu0 0.0
    %1822 = vmatpush1.msra.mxu0 0.0
    %1823 = vmatprep.subr.mxu0 0.0
    %1824 = vmatpush1.msra.mxu0 0.0
    %1825 = vmatprep.subr.mxu0 0.0
    %1826 = vmatpush1.msra.mxu0 0.0
    %1827 = vmatprep.subr.mxu0 0.0
    %1828 = vmatpush1.msra.mxu0 0.0
    %1829 = vmatprep.subr.mxu0 0.0
    %1830 = vmatpush1.msra.mxu0 %v1373
    %1831 = vmatprep.subr.mxu0 0.0
    %1832 = vmatpush1.msra.mxu0 %v1372
    %1833 = vmatprep.subr.mxu0 0.0
    %1834 = vmatpush1.msra.mxu0 %v1371
    %1835 = vmatprep.subr.mxu0 0.0
    %1836 = vmatpush1.msra.mxu0 %v1370
    %1837 = vmatprep.subr.mxu0 0.0
    %1838 = vmatpush2.msra.mxu0 0.0
    %1839 = vmatprep.subr.mxu0 0.0
    %1840 = vmatpush2.msra.mxu0 0.0
    %1841 = vmatprep.subr.mxu0 0.0
    %1842 = vmatpush2.msra.mxu0 0.0
    %1843 = vmatprep.subr.mxu0 0.0
    %1844 = vmatpush2.msra.mxu0 0.0
    %1845 = vmatprep.subr.mxu0 0.0
    %1846 = vmatpush2.msra.mxu0 0.0
    %1847 = vmatprep.subr.mxu0 0.0
    %1848 = vmatpush2.msra.mxu0 0.0
    %1849 = vmatprep.subr.mxu0 0.0
    %1850 = vmatpush2.msra.mxu0 0.0
    %1851 = vmatprep.subr.mxu0 0.0
    %1852 = vmatpush2.msra.mxu0 0.0
    %1853 = vmatprep.subr.mxu0 0.0
    %1854 = vmatpush2.msra.mxu0 0.0
    %1855 = vmatprep.subr.mxu0 0.0
    %1856 = vmatpush2.msra.mxu0 0.0
    %1857 = vmatprep.subr.mxu0 0.0
    %1858 = vmatpush2.msra.mxu0 0.0
    %1859 = vmatprep.subr.mxu0 0.0
    %1860 = vmatpush2.msra.mxu0 0.0
    %1861 = vmatprep.subr.mxu0 0.0
    %1862 = vmatpush2.msra.mxu0 0.0
    %1863 = vmatprep.subr.mxu0 0.0
    %1864 = vmatpush2.msra.mxu0 0.0
    %1865 = vmatprep.subr.mxu0 0.0
    %1866 = vmatpush2.msra.mxu0 0.0
    %1867 = vmatprep.subr.mxu0 0.0
    %1868 = vmatpush2.msra.mxu0 0.0
    %1869 = vmatprep.mubr.f32.mxu0 0.0
    %1870 = vmatmul.mubr.f32.gmra.mxu0 %v1375
    %v1871 = vpop.f32.mrf.mxu0
    %v1872 = vadd.f32 %v1804, %v1871
    %v1873 = vpop.f32.mrf.mxu0
    %1874 = vmatprep.mubr.f32.mxu0 0.0
    %1875 = vmatmul.mubr.f32.gmra.mxu0 %v1378
    %v1876 = vpop.f32.mrf.mxu0
    %v1877 = vadd.f32 %v1804, %v1876
    %v1878 = vpop.f32.mrf.mxu0
    %1879 = vdwg.mxu0
    %v1880 = vmul.f32 %v1551, %v1872
    %v1881 = vmul.f32 %v1553, %v1877
    %v1882 = vadd.f32 %v1793, %v1880
    %v1883 = vadd.f32 %v1798, %v1881
    %v1884 = vtanh.pop %v1882
    %v1885 = vtanh.pop %v1883
    %v1886 = vsub.f32 1.0, %v1719
    %v1887 = vsub.f32 1.0, %v1721
    %v1888 = vmul.f32 %v1886, %v1884
    %v1889 = vmul.f32 %v1887, %v1885
    %v1890 = vmul.f32 %v1719, %v1270
    %v1891 = vmul.f32 %v1721, %v1271
    %v1892 = vadd.f32 %v1888, %v1890
    %v1893 = vadd.f32 %v1889, %v1891
    %1894 = vst.msk [vmem:[#allocation2] sm:$0xff] %vm129, %v1892
    %1895 = vst.msk [vmem:[#allocation2 + $0x8] sm:$0xff] %vm129, %v1893
    // Predicated region
    $region18: #{tpu_custom_call.1} parent=1 // pred_check
      _
    $region19: #{tpu_custom_call.1} parent=1 // pred_check_branch
      %1897 = sbr.rel (0) target = $region21
    $region20: #{tpu_custom_call.1} parent=1 // pred_region
      %s1899 = ssub.s32 256, 256
      %1900 = vsyncadd [#allocation3], %s1899
      %s1901 = sshll.u32 [#allocation2], 4
      %s1902 = int_to_ptr.vmem [resolvable:$true] %s1901
      %1907 = dma.vmem_to_hbm [thread:$0]  %s1902, 256, %s4, [#allocation3], 128, 128, 8
    $region21: #{tpu_custom_call.1} parent=1 // pred_fallthru
      _
    // Predicated region
    $region22: #{tpu_custom_call.1} parent=1 // pred_check
      _
    $region23: #{tpu_custom_call.1} parent=1 // pred_check_branch
      %1909 = sbr.rel (0) target = $region25
    $region24: #{tpu_custom_call.1} parent=1 // pred_region
      %1910 = dma.done [#allocation3], 256
    $region25: #{tpu_custom_call.1} parent=1 // pred_fallthru
      _
    %1911 = vsyncpa [#allocation3], 1

</llo_original>
